<compile_context>
chip_gen: v6e
topology: v6e:2x2x1
jax: 0.10.0
libtpu: 0.0.40
codegen_flags: <defaults>
</compile_context>

<pallas_src>
import functools

import jax
import jax.numpy as jnp
from jax import lax
from jax.experimental import pallas as pl
from jax.experimental.pallas import tpu as pltpu


def conv1d_relu_kernel(x_ref, w_ref, b_ref, o_ref, *, window, ksize):
    # x_ref : (Mt, F_in)        flat (batch*time, features) block; Mt = bb * window
    # w_ref : (K, F_in, F_out)  per-tap weights (bf16 for MXU), tap k = offset k - pad
    # b_ref : (1, F_out)        f32 bias row
    # o_ref : (Mt, F_out)       un-padded output block
    Mt, _ = x_ref.shape
    F_out = o_ref.shape[-1]
    pad = (ksize - 1) // 2

    x = x_ref[...]                                                   # one aligned f32 load

    # In-window position of every row, derived in-kernel (no side input / DMA).
    tpos = lax.broadcasted_iota(jnp.int32, (Mt, 1), 0) % window      # (Mt, 1)

    # Per-tap boundary masks, built once from the single iota.  They implement
    # the "same" zero padding and also stop the sublane roll from leaking data
    # across batch boundaries / wrap-around (|d| <= pad < window).
    offsets = [k - pad for k in range(ksize)]
    masks = {d: jnp.logical_and(tpos + d >= 0, tpos + d < window)
             for d in offsets if d != 0}

    # Tap-accumulation: K small MXU matmuls accumulated in f32 (v7x MRB
    # accumulates in place; avoids the (Mt, K*F) im2col intermediate and the
    # 4-lane-wide lane concatenate entirely).
    acc = jnp.zeros((Mt, F_out), jnp.float32)
    for k, d in enumerate(offsets):
        if d == 0:
            tap = x
        else:
            shifted = pltpu.roll(x, (-d) % Mt, axis=0)               # shifted[t] = x[(t+d) % Mt]
            tap = jnp.where(masks[d], shifted, 0.0)                  # f32 vsel, (Mt,1) mask bcast
        acc = acc + jnp.dot(tap.astype(w_ref.dtype), w_ref[k],       # bf16 MXU, f32 accumulate
                            preferred_element_type=jnp.float32)

    acc = acc + b_ref[...].astype(jnp.float32)                       # (1, F_out) broadcast
    o_ref[...] = jnp.maximum(acc, 0.0).astype(o_ref.dtype)


def conv_layer_forward(x, weight, bias, *, mxu_dtype=jnp.bfloat16,
                       vmem_budget_bytes=24 << 20):
    """Pallas equivalent of ConvLayer.forward.

    x      : (B, W, F) float32   (batch, window, n_features)
    weight : (F, F, K)  PyTorch Conv1d weight layout (out, in, k)
    bias   : (F,)
    returns: (B, W, F) float32
    """
    B, W, F = x.shape
    F_out, F_in, K = weight.shape
    assert F_out == F and F_in == F
    assert K % 2 == 1, "same-padding conv requires odd kernel_size"

    M = B * W
    wbytes = jnp.dtype(mxu_dtype).itemsize

    # ---- block selection -----------------------------------------------------
    # Each grid step handles `bb` whole batch elements (Mt = bb*W rows) so the
    # sublane roll never needs a halo.  VMEM accounting includes the
    # double-buffered in/out blocks, single-buffered weights/bias, the f32
    # accumulator and tap temporaries.
    def vmem_bytes(bb):
        Mt = bb * W
        return (2 * Mt * F_in * 4            # x block, double buffered (f32)
                + 2 * Mt * F_out * 4         # out block, double buffered (f32)
                + K * F_in * F_out * wbytes  # weights, single buffered
                + F_out * 4                  # bias
                + Mt * F_out * 4             # f32 accumulator
                + 3 * Mt * F_in * 4)         # rolled / masked / cast tap temporaries

    def fits(bb, row_mult):
        return (B % bb == 0 and (bb * W) % row_mult == 0
                and vmem_bytes(bb) <= vmem_budget_bytes)

    row_mult = 16 if wbytes == 2 else 8      # bf16 sublane packing prefers 16 rows
    cands = ([c for c in range(B, 0, -1) if fits(c, row_mult)]
             or [c for c in range(B, 0, -1) if fits(c, 8)])
    bb = cands[0] if cands else B            # bb == B always legal (block == full dims)
    # Keep >= 2 grid steps when possible: enables BlockSpec software pipelining
    # (prefetch i+1 while computing i) and lets v7x shard the parallel axis
    # across its two TensorCores.
    multi = [c for c in cands if B // c >= 2]
    if B // bb < 2 and multi:
        bb = multi[0]

    Mt = bb * W
    grid = (B // bb,)
    vmem_limit = int(min(48 << 20, max(16 << 20, 2 * vmem_bytes(bb))))

    # ---- operand layout --------------------------------------------------------
    xf = x.reshape(M, F_in)                                       # metadata-only reshape
    # Per-tap weights: w_taps[k, ci, co] = weight[co, ci, k]; bf16 for the MXU.
    w_taps = jnp.transpose(weight, (2, 1, 0)).astype(mxu_dtype)   # (K, F_in, F_out)
    b_row = bias.reshape(1, F_out).astype(jnp.float32)

    kernel = functools.partial(conv1d_relu_kernel, window=W, ksize=K)
    cost = pl.CostEstimate(
        flops=2 * M * K * F_in * F_out,
        transcendentals=0,
        bytes_accessed=int(M * F_in * 4 + K * F_in * F_out * wbytes
                           + F_out * 4 + M * F_out * 4),
    )

    def call(const_pipeline_mode):
        const_kw = ({"pipeline_mode": const_pipeline_mode}
                    if const_pipeline_mode is not None else {})
        return pl.pallas_call(
            kernel,
            out_shape=jax.ShapeDtypeStruct((M, F_out), x.dtype),
            grid_spec=pltpu.PrefetchScalarGridSpec(
                num_scalar_prefetch=0,
                grid=grid,
                in_specs=[
                    pl.BlockSpec((Mt, F_in), lambda i: (i, 0)),
                    pl.BlockSpec((K, F_in, F_out), lambda i: (0, 0, 0), **const_kw),
                    pl.BlockSpec((1, F_out), lambda i: (0, 0), **const_kw),
                ],
                out_specs=pl.BlockSpec((Mt, F_out), lambda i: (i, 0)),
            ),
            compiler_params=pltpu.CompilerParams(
                dimension_semantics=("parallel",),   # batch blocks are independent
                vmem_limit_bytes=vmem_limit,
            ),
            cost_estimate=cost,
        )(xf, w_taps, b_row)

    try:
        # Constant-index weight/bias blocks are never re-fetched: single-buffer
        # them to save VMEM (matters on v7x's 64 MiB part at realistic F).
        out = call(pl.Buffered(1))
    except Exception:  # toolchain without pipeline_mode support on pallas_call
        out = call(None)

    return out.reshape(B, W, F_out)


if __name__ == "__main__":
    # Small shapes consistent with the module: batch=2, window=16, n_features=4.
    B, W, F, K = 2, 16, 4, 7

    key = jax.random.PRNGKey(0)
    kx, kw, kb = jax.random.split(key, 3)

    x = jax.random.normal(kx, (B, W, F), dtype=jnp.float32)

    # Deterministic init matching PyTorch Conv1d default: U(-sqrt(1/(F*K)), +sqrt(1/(F*K)))
    bound = 1.0 / (F * K) ** 0.5
    weight = jax.random.uniform(kw, (F, F, K), jnp.float32, -bound, bound)
    bias = jax.random.uniform(kb, (F,), jnp.float32, -bound, bound)

    out = conv_layer_forward(x, weight, bias)
    out = jax.block_until_ready(out)

    # Pure-JAX f32 reference (ConstantPad1d + Conv1d + ReLU semantics).
    pad = (K - 1) // 2
    xp = jnp.pad(x, ((0, 0), (pad, pad), (0, 0)))
    w_taps = jnp.transpose(weight, (2, 1, 0))                           # (K, F_in, F_out)
    stacked = jnp.stack([xp[:, k:k + W, :] for k in range(K)], axis=1)  # (B, K, W, F)
    ref = jnp.einsum("bkwc,kcd->bwd", stacked, w_taps) + bias
    ref = jnp.maximum(ref, 0.0)

    assert out.shape == (B, W, F)
    # bf16 MXU operands (f32 accumulation) -> looser tolerance than pure f32.
    assert jnp.allclose(out, ref, atol=3e-2, rtol=3e-2), \
        float(jnp.max(jnp.abs(out - ref)))
    print("KERNEL_OK")
</pallas_src>

<mosaic_0001>
module attributes {stable_mosaic.version = 11 : i64} {
  func.func @conv1d_relu_kernel(%arg0: i32, %arg1: memref<16x4xf32, #tpu.memory_space<vmem>>, %arg2: memref<7x4x4xbf16, #tpu.memory_space<vmem>>, %arg3: memref<1x4xf32, #tpu.memory_space<vmem>>, %arg4: memref<16x4xf32, #tpu.memory_space<vmem>>) attributes {dimension_semantics = [#tpu.dimension_semantics<parallel>], iteration_bounds = array<i64: 2>, scalar_prefetch = 0 : i64, scratch_operands = 0 : i64, tpu.core_type = #tpu.core_type<tc>, window_params = [{transform_indices = @transform_0, window_bounds = array<i64: 16, 4>}, {pipeline_mode = #tpu.pipeline_mode<synchronous>, transform_indices = @transform_1, window_bounds = array<i64: 7, 4, 4>}, {pipeline_mode = #tpu.pipeline_mode<synchronous>, transform_indices = @transform_2, window_bounds = array<i64: 1, 4>}, {transform_indices = @transform_3, window_bounds = array<i64: 16, 4>}]} {
    %c0 = arith.constant 0 : index
    %c0_0 = arith.constant 0 : index
    %0 = vector.load %arg1[%c0, %c0_0] : memref<16x4xf32, #tpu.memory_space<vmem>>, vector<16x4xf32>
    %1 = tpu.iota {dimensions = array<i32: 0>} : vector<16x1xi32>
    %c16_i32 = arith.constant 16 : i32
    %c0_i32 = arith.constant 0 : i32
    %2 = arith.cmpi eq, %c16_i32, %c0_i32 : i32
    %c1_i32 = arith.constant 1 : i32
    %3 = arith.select %2, %c1_i32, %c16_i32 : i32
    %4 = vector.broadcast %3 : i32 to vector<16x1xi32>
    %5 = arith.remsi %1, %4 : vector<16x1xi32>
    %c0_i32_1 = arith.constant 0 : i32
    %6 = vector.broadcast %c0_i32_1 : i32 to vector<16x1xi32>
    %7 = arith.cmpi ne, %5, %6 : vector<16x1xi32>
    %c0_i32_2 = arith.constant 0 : i32
    %8 = vector.broadcast %c0_i32_2 : i32 to vector<16x1xi32>
    %9 = arith.cmpi slt, %5, %8 : vector<16x1xi32>
    %c0_i32_3 = arith.constant 0 : i32
    %10 = arith.cmpi slt, %3, %c0_i32_3 : i32
    %11 = vector.broadcast %10 : i1 to vector<16x1xi1>
    %12 = vector.broadcast %11 : vector<16x1xi1> to vector<16x1xi1>
    %13 = arith.xori %9, %12 : vector<16x1xi1>
    %14 = arith.andi %13, %7 : vector<16x1xi1>
    %15 = vector.broadcast %3 : i32 to vector<16x1xi32>
    %16 = arith.addi %5, %15 : vector<16x1xi32>
    %17 = arith.select %14, %16, %5 : vector<16x1xi1>, vector<16x1xi32>
    %c-3_i32 = arith.constant -3 : i32
    %18 = vector.broadcast %c-3_i32 : i32 to vector<16x1xi32>
    %19 = arith.addi %17, %18 : vector<16x1xi32>
    %c0_i32_4 = arith.constant 0 : i32
    %20 = vector.broadcast %c0_i32_4 : i32 to vector<16x1xi32>
    %21 = arith.cmpi sge, %19, %20 : vector<16x1xi32>
    %c-3_i32_5 = arith.constant -3 : i32
    %22 = vector.broadcast %c-3_i32_5 : i32 to vector<16x1xi32>
    %23 = arith.addi %17, %22 : vector<16x1xi32>
    %c16_i32_6 = arith.constant 16 : i32
    %24 = vector.broadcast %c16_i32_6 : i32 to vector<16x1xi32>
    %25 = arith.cmpi slt, %23, %24 : vector<16x1xi32>
    %26 = arith.andi %21, %25 : vector<16x1xi1>
    %c-2_i32 = arith.constant -2 : i32
    %27 = vector.broadcast %c-2_i32 : i32 to vector<16x1xi32>
    %28 = arith.addi %17, %27 : vector<16x1xi32>
    %c0_i32_7 = arith.constant 0 : i32
    %29 = vector.broadcast %c0_i32_7 : i32 to vector<16x1xi32>
    %30 = arith.cmpi sge, %28, %29 : vector<16x1xi32>
    %c-2_i32_8 = arith.constant -2 : i32
    %31 = vector.broadcast %c-2_i32_8 : i32 to vector<16x1xi32>
    %32 = arith.addi %17, %31 : vector<16x1xi32>
    %c16_i32_9 = arith.constant 16 : i32
    %33 = vector.broadcast %c16_i32_9 : i32 to vector<16x1xi32>
    %34 = arith.cmpi slt, %32, %33 : vector<16x1xi32>
    %35 = arith.andi %30, %34 : vector<16x1xi1>
    %c-1_i32 = arith.constant -1 : i32
    %36 = vector.broadcast %c-1_i32 : i32 to vector<16x1xi32>
    %37 = arith.addi %17, %36 : vector<16x1xi32>
    %c0_i32_10 = arith.constant 0 : i32
    %38 = vector.broadcast %c0_i32_10 : i32 to vector<16x1xi32>
    %39 = arith.cmpi sge, %37, %38 : vector<16x1xi32>
    %c-1_i32_11 = arith.constant -1 : i32
    %40 = vector.broadcast %c-1_i32_11 : i32 to vector<16x1xi32>
    %41 = arith.addi %17, %40 : vector<16x1xi32>
    %c16_i32_12 = arith.constant 16 : i32
    %42 = vector.broadcast %c16_i32_12 : i32 to vector<16x1xi32>
    %43 = arith.cmpi slt, %41, %42 : vector<16x1xi32>
    %44 = arith.andi %39, %43 : vector<16x1xi1>
    %c1_i32_13 = arith.constant 1 : i32
    %45 = vector.broadcast %c1_i32_13 : i32 to vector<16x1xi32>
    %46 = arith.addi %17, %45 : vector<16x1xi32>
    %c0_i32_14 = arith.constant 0 : i32
    %47 = vector.broadcast %c0_i32_14 : i32 to vector<16x1xi32>
    %48 = arith.cmpi sge, %46, %47 : vector<16x1xi32>
    %c1_i32_15 = arith.constant 1 : i32
    %49 = vector.broadcast %c1_i32_15 : i32 to vector<16x1xi32>
    %50 = arith.addi %17, %49 : vector<16x1xi32>
    %c16_i32_16 = arith.constant 16 : i32
    %51 = vector.broadcast %c16_i32_16 : i32 to vector<16x1xi32>
    %52 = arith.cmpi slt, %50, %51 : vector<16x1xi32>
    %53 = arith.andi %48, %52 : vector<16x1xi1>
    %c2_i32 = arith.constant 2 : i32
    %54 = vector.broadcast %c2_i32 : i32 to vector<16x1xi32>
    %55 = arith.addi %17, %54 : vector<16x1xi32>
    %c0_i32_17 = arith.constant 0 : i32
    %56 = vector.broadcast %c0_i32_17 : i32 to vector<16x1xi32>
    %57 = arith.cmpi sge, %55, %56 : vector<16x1xi32>
    %c2_i32_18 = arith.constant 2 : i32
    %58 = vector.broadcast %c2_i32_18 : i32 to vector<16x1xi32>
    %59 = arith.addi %17, %58 : vector<16x1xi32>
    %c16_i32_19 = arith.constant 16 : i32
    %60 = vector.broadcast %c16_i32_19 : i32 to vector<16x1xi32>
    %61 = arith.cmpi slt, %59, %60 : vector<16x1xi32>
    %62 = arith.andi %57, %61 : vector<16x1xi1>
    %c3_i32 = arith.constant 3 : i32
    %63 = vector.broadcast %c3_i32 : i32 to vector<16x1xi32>
    %64 = arith.addi %17, %63 : vector<16x1xi32>
    %c0_i32_20 = arith.constant 0 : i32
    %65 = vector.broadcast %c0_i32_20 : i32 to vector<16x1xi32>
    %66 = arith.cmpi sge, %64, %65 : vector<16x1xi32>
    %c3_i32_21 = arith.constant 3 : i32
    %67 = vector.broadcast %c3_i32_21 : i32 to vector<16x1xi32>
    %68 = arith.addi %17, %67 : vector<16x1xi32>
    %c16_i32_22 = arith.constant 16 : i32
    %69 = vector.broadcast %c16_i32_22 : i32 to vector<16x1xi32>
    %70 = arith.cmpi slt, %68, %69 : vector<16x1xi32>
    %71 = arith.andi %66, %70 : vector<16x1xi1>
    %cst = arith.constant 0.000000e+00 : f32
    %72 = vector.broadcast %cst : f32 to vector<16x4xf32>
    %c3_i32_23 = arith.constant 3 : i32
    %73 = tpu.dynamic_rotate %0 by %c3_i32_23 dim 0 : vector<16x4xf32>, i32 -> vector<16x4xf32>
    %cst_24 = arith.constant 0.000000e+00 : f32
    %74 = vector.shape_cast %26 : vector<16x1xi1> to vector<16x1xi1>
    %75 = vector.broadcast %74 : vector<16x1xi1> to vector<16x4xi1>
    %76 = vector.broadcast %cst_24 : f32 to vector<16x4xf32>
    %77 = arith.select %75, %73, %76 : vector<16x4xi1>, vector<16x4xf32>
    %78 = arith.truncf %77 : vector<16x4xf32> to vector<16x4xbf16>
    %c0_25 = arith.constant 0 : index
    %c0_26 = arith.constant 0 : index
    %c0_27 = arith.constant 0 : index
    %79 = vector.load %arg2[%c0_25, %c0_26, %c0_27] : memref<7x4x4xbf16, #tpu.memory_space<vmem>>, vector<1x4x4xbf16>
    %80 = vector.shape_cast %79 : vector<1x4x4xbf16> to vector<4x4xbf16>
    %cst_28 = arith.constant dense<0.000000e+00> : vector<16x4xf32>
    %81 = tpu.matmul %78, %80, %cst_28 {dimension_numbers = #tpu.dot_dimension_numbers<[1], [0], [0], [1], [0, 0, 1, 1], [], []>} : vector<16x4xbf16>, vector<4x4xbf16>, vector<16x4xf32> -> vector<16x4xf32>
    %82 = arith.addf %72, %81 : vector<16x4xf32>
    %c2_i32_29 = arith.constant 2 : i32
    %83 = tpu.dynamic_rotate %0 by %c2_i32_29 dim 0 : vector<16x4xf32>, i32 -> vector<16x4xf32>
    %cst_30 = arith.constant 0.000000e+00 : f32
    %84 = vector.shape_cast %35 : vector<16x1xi1> to vector<16x1xi1>
    %85 = vector.broadcast %84 : vector<16x1xi1> to vector<16x4xi1>
    %86 = vector.broadcast %cst_30 : f32 to vector<16x4xf32>
    %87 = arith.select %85, %83, %86 : vector<16x4xi1>, vector<16x4xf32>
    %88 = arith.truncf %87 : vector<16x4xf32> to vector<16x4xbf16>
    %c1 = arith.constant 1 : index
    %c0_31 = arith.constant 0 : index
    %c0_32 = arith.constant 0 : index
    %89 = vector.load %arg2[%c1, %c0_31, %c0_32] : memref<7x4x4xbf16, #tpu.memory_space<vmem>>, vector<1x4x4xbf16>
    %90 = vector.shape_cast %89 : vector<1x4x4xbf16> to vector<4x4xbf16>
    %cst_33 = arith.constant dense<0.000000e+00> : vector<16x4xf32>
    %91 = tpu.matmul %88, %90, %cst_33 {dimension_numbers = #tpu.dot_dimension_numbers<[1], [0], [0], [1], [0, 0, 1, 1], [], []>} : vector<16x4xbf16>, vector<4x4xbf16>, vector<16x4xf32> -> vector<16x4xf32>
    %92 = arith.addf %82, %91 : vector<16x4xf32>
    %c1_i32_34 = arith.constant 1 : i32
    %93 = tpu.dynamic_rotate %0 by %c1_i32_34 dim 0 : vector<16x4xf32>, i32 -> vector<16x4xf32>
    %cst_35 = arith.constant 0.000000e+00 : f32
    %94 = vector.shape_cast %44 : vector<16x1xi1> to vector<16x1xi1>
    %95 = vector.broadcast %94 : vector<16x1xi1> to vector<16x4xi1>
    %96 = vector.broadcast %cst_35 : f32 to vector<16x4xf32>
    %97 = arith.select %95, %93, %96 : vector<16x4xi1>, vector<16x4xf32>
    %98 = arith.truncf %97 : vector<16x4xf32> to vector<16x4xbf16>
    %c2 = arith.constant 2 : index
    %c0_36 = arith.constant 0 : index
    %c0_37 = arith.constant 0 : index
    %99 = vector.load %arg2[%c2, %c0_36, %c0_37] : memref<7x4x4xbf16, #tpu.memory_space<vmem>>, vector<1x4x4xbf16>
    %100 = vector.shape_cast %99 : vector<1x4x4xbf16> to vector<4x4xbf16>
    %cst_38 = arith.constant dense<0.000000e+00> : vector<16x4xf32>
    %101 = tpu.matmul %98, %100, %cst_38 {dimension_numbers = #tpu.dot_dimension_numbers<[1], [0], [0], [1], [0, 0, 1, 1], [], []>} : vector<16x4xbf16>, vector<4x4xbf16>, vector<16x4xf32> -> vector<16x4xf32>
    %102 = arith.addf %92, %101 : vector<16x4xf32>
    %103 = arith.truncf %0 : vector<16x4xf32> to vector<16x4xbf16>
    %c3 = arith.constant 3 : index
    %c0_39 = arith.constant 0 : index
    %c0_40 = arith.constant 0 : index
    %104 = vector.load %arg2[%c3, %c0_39, %c0_40] : memref<7x4x4xbf16, #tpu.memory_space<vmem>>, vector<1x4x4xbf16>
    %105 = vector.shape_cast %104 : vector<1x4x4xbf16> to vector<4x4xbf16>
    %cst_41 = arith.constant dense<0.000000e+00> : vector<16x4xf32>
    %106 = tpu.matmul %103, %105, %cst_41 {dimension_numbers = #tpu.dot_dimension_numbers<[1], [0], [0], [1], [0, 0, 1, 1], [], []>} : vector<16x4xbf16>, vector<4x4xbf16>, vector<16x4xf32> -> vector<16x4xf32>
    %107 = arith.addf %102, %106 : vector<16x4xf32>
    %c15_i32 = arith.constant 15 : i32
    %108 = tpu.dynamic_rotate %0 by %c15_i32 dim 0 : vector<16x4xf32>, i32 -> vector<16x4xf32>
    %cst_42 = arith.constant 0.000000e+00 : f32
    %109 = vector.shape_cast %53 : vector<16x1xi1> to vector<16x1xi1>
    %110 = vector.broadcast %109 : vector<16x1xi1> to vector<16x4xi1>
    %111 = vector.broadcast %cst_42 : f32 to vector<16x4xf32>
    %112 = arith.select %110, %108, %111 : vector<16x4xi1>, vector<16x4xf32>
    %113 = arith.truncf %112 : vector<16x4xf32> to vector<16x4xbf16>
    %c4 = arith.constant 4 : index
    %c0_43 = arith.constant 0 : index
    %c0_44 = arith.constant 0 : index
    %114 = vector.load %arg2[%c4, %c0_43, %c0_44] : memref<7x4x4xbf16, #tpu.memory_space<vmem>>, vector<1x4x4xbf16>
    %115 = vector.shape_cast %114 : vector<1x4x4xbf16> to vector<4x4xbf16>
    %cst_45 = arith.constant dense<0.000000e+00> : vector<16x4xf32>
    %116 = tpu.matmul %113, %115, %cst_45 {dimension_numbers = #tpu.dot_dimension_numbers<[1], [0], [0], [1], [0, 0, 1, 1], [], []>} : vector<16x4xbf16>, vector<4x4xbf16>, vector<16x4xf32> -> vector<16x4xf32>
    %117 = arith.addf %107, %116 : vector<16x4xf32>
    %c14_i32 = arith.constant 14 : i32
    %118 = tpu.dynamic_rotate %0 by %c14_i32 dim 0 : vector<16x4xf32>, i32 -> vector<16x4xf32>
    %cst_46 = arith.constant 0.000000e+00 : f32
    %119 = vector.shape_cast %62 : vector<16x1xi1> to vector<16x1xi1>
    %120 = vector.broadcast %119 : vector<16x1xi1> to vector<16x4xi1>
    %121 = vector.broadcast %cst_46 : f32 to vector<16x4xf32>
    %122 = arith.select %120, %118, %121 : vector<16x4xi1>, vector<16x4xf32>
    %123 = arith.truncf %122 : vector<16x4xf32> to vector<16x4xbf16>
    %c5 = arith.constant 5 : index
    %c0_47 = arith.constant 0 : index
    %c0_48 = arith.constant 0 : index
    %124 = vector.load %arg2[%c5, %c0_47, %c0_48] : memref<7x4x4xbf16, #tpu.memory_space<vmem>>, vector<1x4x4xbf16>
    %125 = vector.shape_cast %124 : vector<1x4x4xbf16> to vector<4x4xbf16>
    %cst_49 = arith.constant dense<0.000000e+00> : vector<16x4xf32>
    %126 = tpu.matmul %123, %125, %cst_49 {dimension_numbers = #tpu.dot_dimension_numbers<[1], [0], [0], [1], [0, 0, 1, 1], [], []>} : vector<16x4xbf16>, vector<4x4xbf16>, vector<16x4xf32> -> vector<16x4xf32>
    %127 = arith.addf %117, %126 : vector<16x4xf32>
    %c13_i32 = arith.constant 13 : i32
    %128 = tpu.dynamic_rotate %0 by %c13_i32 dim 0 : vector<16x4xf32>, i32 -> vector<16x4xf32>
    %cst_50 = arith.constant 0.000000e+00 : f32
    %129 = vector.shape_cast %71 : vector<16x1xi1> to vector<16x1xi1>
    %130 = vector.broadcast %129 : vector<16x1xi1> to vector<16x4xi1>
    %131 = vector.broadcast %cst_50 : f32 to vector<16x4xf32>
    %132 = arith.select %130, %128, %131 : vector<16x4xi1>, vector<16x4xf32>
    %133 = arith.truncf %132 : vector<16x4xf32> to vector<16x4xbf16>
    %c6 = arith.constant 6 : index
    %c0_51 = arith.constant 0 : index
    %c0_52 = arith.constant 0 : index
    %134 = vector.load %arg2[%c6, %c0_51, %c0_52] : memref<7x4x4xbf16, #tpu.memory_space<vmem>>, vector<1x4x4xbf16>
    %135 = vector.shape_cast %134 : vector<1x4x4xbf16> to vector<4x4xbf16>
    %cst_53 = arith.constant dense<0.000000e+00> : vector<16x4xf32>
    %136 = tpu.matmul %133, %135, %cst_53 {dimension_numbers = #tpu.dot_dimension_numbers<[1], [0], [0], [1], [0, 0, 1, 1], [], []>} : vector<16x4xbf16>, vector<4x4xbf16>, vector<16x4xf32> -> vector<16x4xf32>
    %137 = arith.addf %127, %136 : vector<16x4xf32>
    %c0_54 = arith.constant 0 : index
    %c0_55 = arith.constant 0 : index
    %138 = vector.load %arg3[%c0_54, %c0_55] : memref<1x4xf32, #tpu.memory_space<vmem>>, vector<1x4xf32>
    %139 = vector.broadcast %138 : vector<1x4xf32> to vector<16x4xf32>
    %140 = arith.addf %137, %139 : vector<16x4xf32>
    %cst_56 = arith.constant 0.000000e+00 : f32
    %141 = vector.broadcast %cst_56 : f32 to vector<16x4xf32>
    %142 = arith.maximumf %140, %141 : vector<16x4xf32>
    %c0_57 = arith.constant 0 : index
    %c0_58 = arith.constant 0 : index
    %143 = vector.load %arg4[%c0_57, %c0_58] : memref<16x4xf32, #tpu.memory_space<vmem>>, vector<16x4xf32>
    tpu.vector_store %arg4[%c0_57, %c0_58], %142 {strides = array<i32>} : memref<16x4xf32, #tpu.memory_space<vmem>>, vector<16x4xf32>,
    return
  }
  func.func @transform_0(%arg0: i32) -> (i32, i32) {
    %c0_i32 = arith.constant 0 : i32
    %c0_i32_0 = arith.constant 0 : i32
    return %arg0, %c0_i32 : i32, i32
  }
  func.func @transform_1(%arg0: i32) -> (i32, i32, i32) {
    %c0_i32 = arith.constant 0 : i32
    %c0_i32_0 = arith.constant 0 : i32
    %c0_i32_1 = arith.constant 0 : i32
    %c0_i32_2 = arith.constant 0 : i32
    return %c0_i32, %c0_i32_0, %c0_i32_1 : i32, i32, i32
  }
  func.func @transform_2(%arg0: i32) -> (i32, i32) {
    %c0_i32 = arith.constant 0 : i32
    %c0_i32_0 = arith.constant 0 : i32
    %c0_i32_1 = arith.constant 0 : i32
    return %c0_i32, %c0_i32_0 : i32, i32
  }
  func.func @transform_3(%arg0: i32) -> (i32, i32) {
    %c0_i32 = arith.constant 0 : i32
    %c0_i32_0 = arith.constant 0 : i32
    return %arg0, %c0_i32 : i32, i32
  }
}

module attributes {stable_mosaic.version = 11 : i64} {
  func.func @conv1d_relu_kernel(%arg0: i32, %arg1: memref<16x4xf32, #tpu.memory_space<vmem>>, %arg2: memref<7x4x4xbf16, #tpu.memory_space<vmem>>, %arg3: memref<1x4xf32, #tpu.memory_space<vmem>>, %arg4: memref<16x4xf32, #tpu.memory_space<vmem>>) attributes {dimension_semantics = [#tpu.dimension_semantics<parallel>], iteration_bounds = array<i64: 2>, scalar_prefetch = 0 : i64, scratch_operands = 0 : i64, tpu.core_type = #tpu.core_type<tc>, window_params = [{transform_indices = @transform_0, window_bounds = array<i64: 16, 4>}, {pipeline_mode = #tpu.pipeline_mode<synchronous>, transform_indices = @transform_1, window_bounds = array<i64: 7, 4, 4>}, {pipeline_mode = #tpu.pipeline_mode<synchronous>, transform_indices = @transform_2, window_bounds = array<i64: 1, 4>}, {transform_indices = @transform_3, window_bounds = array<i64: 16, 4>}]} {
    %c0 = arith.constant 0 : index
    %c0_0 = arith.constant 0 : index
    %0 = vector.load %arg1[%c0, %c0_0] : memref<16x4xf32, #tpu.memory_space<vmem>>, vector<16x4xf32>
    %1 = tpu.iota {dimensions = array<i32: 0>} : vector<16x1xi32>
    %c16_i32 = arith.constant 16 : i32
    %c0_i32 = arith.constant 0 : i32
    %2 = arith.cmpi eq, %c16_i32, %c0_i32 : i32
    %c1_i32 = arith.constant 1 : i32
    %3 = arith.select %2, %c1_i32, %c16_i32 : i32
    %4 = vector.broadcast %3 : i32 to vector<16x1xi32>
    %5 = arith.remsi %1, %4 : vector<16x1xi32>
    %c0_i32_1 = arith.constant 0 : i32
    %6 = vector.broadcast %c0_i32_1 : i32 to vector<16x1xi32>
    %7 = arith.cmpi ne, %5, %6 : vector<16x1xi32>
    %c0_i32_2 = arith.constant 0 : i32
    %8 = vector.broadcast %c0_i32_2 : i32 to vector<16x1xi32>
    %9 = arith.cmpi slt, %5, %8 : vector<16x1xi32>
    %c0_i32_3 = arith.constant 0 : i32
    %10 = arith.cmpi slt, %3, %c0_i32_3 : i32
    %11 = vector.broadcast %10 : i1 to vector<16x1xi1>
    %12 = vector.broadcast %11 : vector<16x1xi1> to vector<16x1xi1>
    %13 = arith.xori %9, %12 : vector<16x1xi1>
    %14 = arith.andi %13, %7 : vector<16x1xi1>
    %15 = vector.broadcast %3 : i32 to vector<16x1xi32>
    %16 = arith.addi %5, %15 : vector<16x1xi32>
    %17 = arith.select %14, %16, %5 : vector<16x1xi1>, vector<16x1xi32>
    %c-3_i32 = arith.constant -3 : i32
    %18 = vector.broadcast %c-3_i32 : i32 to vector<16x1xi32>
    %19 = arith.addi %17, %18 : vector<16x1xi32>
    %c0_i32_4 = arith.constant 0 : i32
    %20 = vector.broadcast %c0_i32_4 : i32 to vector<16x1xi32>
    %21 = arith.cmpi sge, %19, %20 : vector<16x1xi32>
    %c-3_i32_5 = arith.constant -3 : i32
    %22 = vector.broadcast %c-3_i32_5 : i32 to vector<16x1xi32>
    %23 = arith.addi %17, %22 : vector<16x1xi32>
    %c16_i32_6 = arith.constant 16 : i32
    %24 = vector.broadcast %c16_i32_6 : i32 to vector<16x1xi32>
    %25 = arith.cmpi slt, %23, %24 : vector<16x1xi32>
    %26 = arith.andi %21, %25 : vector<16x1xi1>
    %c-2_i32 = arith.constant -2 : i32
    %27 = vector.broadcast %c-2_i32 : i32 to vector<16x1xi32>
    %28 = arith.addi %17, %27 : vector<16x1xi32>
    %c0_i32_7 = arith.constant 0 : i32
    %29 = vector.broadcast %c0_i32_7 : i32 to vector<16x1xi32>
    %30 = arith.cmpi sge, %28, %29 : vector<16x1xi32>
    %c-2_i32_8 = arith.constant -2 : i32
    %31 = vector.broadcast %c-2_i32_8 : i32 to vector<16x1xi32>
    %32 = arith.addi %17, %31 : vector<16x1xi32>
    %c16_i32_9 = arith.constant 16 : i32
    %33 = vector.broadcast %c16_i32_9 : i32 to vector<16x1xi32>
    %34 = arith.cmpi slt, %32, %33 : vector<16x1xi32>
    %35 = arith.andi %30, %34 : vector<16x1xi1>
    %c-1_i32 = arith.constant -1 : i32
    %36 = vector.broadcast %c-1_i32 : i32 to vector<16x1xi32>
    %37 = arith.addi %17, %36 : vector<16x1xi32>
    %c0_i32_10 = arith.constant 0 : i32
    %38 = vector.broadcast %c0_i32_10 : i32 to vector<16x1xi32>
    %39 = arith.cmpi sge, %37, %38 : vector<16x1xi32>
    %c-1_i32_11 = arith.constant -1 : i32
    %40 = vector.broadcast %c-1_i32_11 : i32 to vector<16x1xi32>
    %41 = arith.addi %17, %40 : vector<16x1xi32>
    %c16_i32_12 = arith.constant 16 : i32
    %42 = vector.broadcast %c16_i32_12 : i32 to vector<16x1xi32>
    %43 = arith.cmpi slt, %41, %42 : vector<16x1xi32>
    %44 = arith.andi %39, %43 : vector<16x1xi1>
    %c1_i32_13 = arith.constant 1 : i32
    %45 = vector.broadcast %c1_i32_13 : i32 to vector<16x1xi32>
    %46 = arith.addi %17, %45 : vector<16x1xi32>
    %c0_i32_14 = arith.constant 0 : i32
    %47 = vector.broadcast %c0_i32_14 : i32 to vector<16x1xi32>
    %48 = arith.cmpi sge, %46, %47 : vector<16x1xi32>
    %c1_i32_15 = arith.constant 1 : i32
    %49 = vector.broadcast %c1_i32_15 : i32 to vector<16x1xi32>
    %50 = arith.addi %17, %49 : vector<16x1xi32>
    %c16_i32_16 = arith.constant 16 : i32
    %51 = vector.broadcast %c16_i32_16 : i32 to vector<16x1xi32>
    %52 = arith.cmpi slt, %50, %51 : vector<16x1xi32>
    %53 = arith.andi %48, %52 : vector<16x1xi1>
    %c2_i32 = arith.constant 2 : i32
    %54 = vector.broadcast %c2_i32 : i32 to vector<16x1xi32>
    %55 = arith.addi %17, %54 : vector<16x1xi32>
    %c0_i32_17 = arith.constant 0 : i32
    %56 = vector.broadcast %c0_i32_17 : i32 to vector<16x1xi32>
    %57 = arith.cmpi sge, %55, %56 : vector<16x1xi32>
    %c2_i32_18 = arith.constant 2 : i32
    %58 = vector.broadcast %c2_i32_18 : i32 to vector<16x1xi32>
    %59 = arith.addi %17, %58 : vector<16x1xi32>
    %c16_i32_19 = arith.constant 16 : i32
    %60 = vector.broadcast %c16_i32_19 : i32 to vector<16x1xi32>
    %61 = arith.cmpi slt, %59, %60 : vector<16x1xi32>
    %62 = arith.andi %57, %61 : vector<16x1xi1>
    %c3_i32 = arith.constant 3 : i32
    %63 = vector.broadcast %c3_i32 : i32 to vector<16x1xi32>
    %64 = arith.addi %17, %63 : vector<16x1xi32>
    %c0_i32_20 = arith.constant 0 : i32
    %65 = vector.broadcast %c0_i32_20 : i32 to vector<16x1xi32>
    %66 = arith.cmpi sge, %64, %65 : vector<16x1xi32>
    %c3_i32_21 = arith.constant 3 : i32
    %67 = vector.broadcast %c3_i32_21 : i32 to vector<16x1xi32>
    %68 = arith.addi %17, %67 : vector<16x1xi32>
    %c16_i32_22 = arith.constant 16 : i32
    %69 = vector.broadcast %c16_i32_22 : i32 to vector<16x1xi32>
    %70 = arith.cmpi slt, %68, %69 : vector<16x1xi32>
    %71 = arith.andi %66, %70 : vector<16x1xi1>
    %cst = arith.constant 0.000000e+00 : f32
    %72 = vector.broadcast %cst : f32 to vector<16x4xf32>
    %c3_i32_23 = arith.constant 3 : i32
    %73 = tpu.dynamic_rotate %0 by %c3_i32_23 dim 0 : vector<16x4xf32>, i32 -> vector<16x4xf32>
    %cst_24 = arith.constant 0.000000e+00 : f32
    %74 = vector.shape_cast %26 : vector<16x1xi1> to vector<16x1xi1>
    %75 = vector.broadcast %74 : vector<16x1xi1> to vector<16x4xi1>
    %76 = vector.broadcast %cst_24 : f32 to vector<16x4xf32>
    %77 = arith.select %75, %73, %76 : vector<16x4xi1>, vector<16x4xf32>
    %78 = arith.truncf %77 : vector<16x4xf32> to vector<16x4xbf16>
    %c0_25 = arith.constant 0 : index
    %c0_26 = arith.constant 0 : index
    %c0_27 = arith.constant 0 : index
    %79 = vector.load %arg2[%c0_25, %c0_26, %c0_27] : memref<7x4x4xbf16, #tpu.memory_space<vmem>>, vector<1x4x4xbf16>
    %80 = vector.shape_cast %79 : vector<1x4x4xbf16> to vector<4x4xbf16>
    %cst_28 = arith.constant dense<0.000000e+00> : vector<16x4xf32>
    %81 = tpu.matmul %78, %80, %cst_28 {dimension_numbers = #tpu.dot_dimension_numbers<[1], [0], [0], [1], [0, 0, 1, 1], [], []>} : vector<16x4xbf16>, vector<4x4xbf16>, vector<16x4xf32> -> vector<16x4xf32>
    %82 = arith.addf %72, %81 : vector<16x4xf32>
    %c2_i32_29 = arith.constant 2 : i32
    %83 = tpu.dynamic_rotate %0 by %c2_i32_29 dim 0 : vector<16x4xf32>, i32 -> vector<16x4xf32>
    %cst_30 = arith.constant 0.000000e+00 : f32
    %84 = vector.shape_cast %35 : vector<16x1xi1> to vector<16x1xi1>
    %85 = vector.broadcast %84 : vector<16x1xi1> to vector<16x4xi1>
    %86 = vector.broadcast %cst_30 : f32 to vector<16x4xf32>
    %87 = arith.select %85, %83, %86 : vector<16x4xi1>, vector<16x4xf32>
    %88 = arith.truncf %87 : vector<16x4xf32> to vector<16x4xbf16>
    %c1 = arith.constant 1 : index
    %c0_31 = arith.constant 0 : index
    %c0_32 = arith.constant 0 : index
    %89 = vector.load %arg2[%c1, %c0_31, %c0_32] : memref<7x4x4xbf16, #tpu.memory_space<vmem>>, vector<1x4x4xbf16>
    %90 = vector.shape_cast %89 : vector<1x4x4xbf16> to vector<4x4xbf16>
    %cst_33 = arith.constant dense<0.000000e+00> : vector<16x4xf32>
    %91 = tpu.matmul %88, %90, %cst_33 {dimension_numbers = #tpu.dot_dimension_numbers<[1], [0], [0], [1], [0, 0, 1, 1], [], []>} : vector<16x4xbf16>, vector<4x4xbf16>, vector<16x4xf32> -> vector<16x4xf32>
    %92 = arith.addf %82, %91 : vector<16x4xf32>
    %c1_i32_34 = arith.constant 1 : i32
    %93 = tpu.dynamic_rotate %0 by %c1_i32_34 dim 0 : vector<16x4xf32>, i32 -> vector<16x4xf32>
    %cst_35 = arith.constant 0.000000e+00 : f32
    %94 = vector.shape_cast %44 : vector<16x1xi1> to vector<16x1xi1>
    %95 = vector.broadcast %94 : vector<16x1xi1> to vector<16x4xi1>
    %96 = vector.broadcast %cst_35 : f32 to vector<16x4xf32>
    %97 = arith.select %95, %93, %96 : vector<16x4xi1>, vector<16x4xf32>
    %98 = arith.truncf %97 : vector<16x4xf32> to vector<16x4xbf16>
    %c2 = arith.constant 2 : index
    %c0_36 = arith.constant 0 : index
    %c0_37 = arith.constant 0 : index
    %99 = vector.load %arg2[%c2, %c0_36, %c0_37] : memref<7x4x4xbf16, #tpu.memory_space<vmem>>, vector<1x4x4xbf16>
    %100 = vector.shape_cast %99 : vector<1x4x4xbf16> to vector<4x4xbf16>
    %cst_38 = arith.constant dense<0.000000e+00> : vector<16x4xf32>
    %101 = tpu.matmul %98, %100, %cst_38 {dimension_numbers = #tpu.dot_dimension_numbers<[1], [0], [0], [1], [0, 0, 1, 1], [], []>} : vector<16x4xbf16>, vector<4x4xbf16>, vector<16x4xf32> -> vector<16x4xf32>
    %102 = arith.addf %92, %101 : vector<16x4xf32>
    %103 = arith.truncf %0 : vector<16x4xf32> to vector<16x4xbf16>
    %c3 = arith.constant 3 : index
    %c0_39 = arith.constant 0 : index
    %c0_40 = arith.constant 0 : index
    %104 = vector.load %arg2[%c3, %c0_39, %c0_40] : memref<7x4x4xbf16, #tpu.memory_space<vmem>>, vector<1x4x4xbf16>
    %105 = vector.shape_cast %104 : vector<1x4x4xbf16> to vector<4x4xbf16>
    %cst_41 = arith.constant dense<0.000000e+00> : vector<16x4xf32>
    %106 = tpu.matmul %103, %105, %cst_41 {dimension_numbers = #tpu.dot_dimension_numbers<[1], [0], [0], [1], [0, 0, 1, 1], [], []>} : vector<16x4xbf16>, vector<4x4xbf16>, vector<16x4xf32> -> vector<16x4xf32>
    %107 = arith.addf %102, %106 : vector<16x4xf32>
    %c15_i32 = arith.constant 15 : i32
    %108 = tpu.dynamic_rotate %0 by %c15_i32 dim 0 : vector<16x4xf32>, i32 -> vector<16x4xf32>
    %cst_42 = arith.constant 0.000000e+00 : f32
    %109 = vector.shape_cast %53 : vector<16x1xi1> to vector<16x1xi1>
    %110 = vector.broadcast %109 : vector<16x1xi1> to vector<16x4xi1>
    %111 = vector.broadcast %cst_42 : f32 to vector<16x4xf32>
    %112 = arith.select %110, %108, %111 : vector<16x4xi1>, vector<16x4xf32>
    %113 = arith.truncf %112 : vector<16x4xf32> to vector<16x4xbf16>
    %c4 = arith.constant 4 : index
    %c0_43 = arith.constant 0 : index
    %c0_44 = arith.constant 0 : index
    %114 = vector.load %arg2[%c4, %c0_43, %c0_44] : memref<7x4x4xbf16, #tpu.memory_space<vmem>>, vector<1x4x4xbf16>
    %115 = vector.shape_cast %114 : vector<1x4x4xbf16> to vector<4x4xbf16>
    %cst_45 = arith.constant dense<0.000000e+00> : vector<16x4xf32>
    %116 = tpu.matmul %113, %115, %cst_45 {dimension_numbers = #tpu.dot_dimension_numbers<[1], [0], [0], [1], [0, 0, 1, 1], [], []>} : vector<16x4xbf16>, vector<4x4xbf16>, vector<16x4xf32> -> vector<16x4xf32>
    %117 = arith.addf %107, %116 : vector<16x4xf32>
    %c14_i32 = arith.constant 14 : i32
    %118 = tpu.dynamic_rotate %0 by %c14_i32 dim 0 : vector<16x4xf32>, i32 -> vector<16x4xf32>
    %cst_46 = arith.constant 0.000000e+00 : f32
    %119 = vector.shape_cast %62 : vector<16x1xi1> to vector<16x1xi1>
    %120 = vector.broadcast %119 : vector<16x1xi1> to vector<16x4xi1>
    %121 = vector.broadcast %cst_46 : f32 to vector<16x4xf32>
    %122 = arith.select %120, %118, %121 : vector<16x4xi1>, vector<16x4xf32>
    %123 = arith.truncf %122 : vector<16x4xf32> to vector<16x4xbf16>
    %c5 = arith.constant 5 : index
    %c0_47 = arith.constant 0 : index
    %c0_48 = arith.constant 0 : index
    %124 = vector.load %arg2[%c5, %c0_47, %c0_48] : memref<7x4x4xbf16, #tpu.memory_space<vmem>>, vector<1x4x4xbf16>
    %125 = vector.shape_cast %124 : vector<1x4x4xbf16> to vector<4x4xbf16>
    %cst_49 = arith.constant dense<0.000000e+00> : vector<16x4xf32>
    %126 = tpu.matmul %123, %125, %cst_49 {dimension_numbers = #tpu.dot_dimension_numbers<[1], [0], [0], [1], [0, 0, 1, 1], [], []>} : vector<16x4xbf16>, vector<4x4xbf16>, vector<16x4xf32> -> vector<16x4xf32>
    %127 = arith.addf %117, %126 : vector<16x4xf32>
    %c13_i32 = arith.constant 13 : i32
    %128 = tpu.dynamic_rotate %0 by %c13_i32 dim 0 : vector<16x4xf32>, i32 -> vector<16x4xf32>
    %cst_50 = arith.constant 0.000000e+00 : f32
    %129 = vector.shape_cast %71 : vector<16x1xi1> to vector<16x1xi1>
    %130 = vector.broadcast %129 : vector<16x1xi1> to vector<16x4xi1>
    %131 = vector.broadcast %cst_50 : f32 to vector<16x4xf32>
    %132 = arith.select %130, %128, %131 : vector<16x4xi1>, vector<16x4xf32>
    %133 = arith.truncf %132 : vector<16x4xf32> to vector<16x4xbf16>
    %c6 = arith.constant 6 : index
    %c0_51 = arith.constant 0 : index
    %c0_52 = arith.constant 0 : index
    %134 = vector.load %arg2[%c6, %c0_51, %c0_52] : memref<7x4x4xbf16, #tpu.memory_space<vmem>>, vector<1x4x4xbf16>
    %135 = vector.shape_cast %134 : vector<1x4x4xbf16> to vector<4x4xbf16>
    %cst_53 = arith.constant dense<0.000000e+00> : vector<16x4xf32>
    %136 = tpu.matmul %133, %135, %cst_53 {dimension_numbers = #tpu.dot_dimension_numbers<[1], [0], [0], [1], [0, 0, 1, 1], [], []>} : vector<16x4xbf16>, vector<4x4xbf16>, vector<16x4xf32> -> vector<16x4xf32>
    %137 = arith.addf %127, %136 : vector<16x4xf32>
    %c0_54 = arith.constant 0 : index
    %c0_55 = arith.constant 0 : index
    %138 = vector.load %arg3[%c0_54, %c0_55] : memref<1x4xf32, #tpu.memory_space<vmem>>, vector<1x4xf32>
    %139 = vector.broadcast %138 : vector<1x4xf32> to vector<16x4xf32>
    %140 = arith.addf %137, %139 : vector<16x4xf32>
    %cst_56 = arith.constant 0.000000e+00 : f32
    %141 = vector.broadcast %cst_56 : f32 to vector<16x4xf32>
    %142 = arith.maximumf %140, %141 : vector<16x4xf32>
    %c0_57 = arith.constant 0 : index
    %c0_58 = arith.constant 0 : index
    %143 = vector.load %arg4[%c0_57, %c0_58] : memref<16x4xf32, #tpu.memory_space<vmem>>, vector<16x4xf32>
    tpu.vector_store %arg4[%c0_57, %c0_58], %142 {strides = array<i32>} : memref<16x4xf32, #tpu.memory_space<vmem>>, vector<16x4xf32>,
    return
  }
  func.func @transform_0(%arg0: i32) -> (i32, i32) {
    %c0_i32 = arith.constant 0 : i32
    %c0_i32_0 = arith.constant 0 : i32
    return %arg0, %c0_i32 : i32, i32
  }
  func.func @transform_1(%arg0: i32) -> (i32, i32, i32) {
    %c0_i32 = arith.constant 0 : i32
    %c0_i32_0 = arith.constant 0 : i32
    %c0_i32_1 = arith.constant 0 : i32
    %c0_i32_2 = arith.constant 0 : i32
    return %c0_i32, %c0_i32_0, %c0_i32_1 : i32, i32, i32
  }
  func.func @transform_2(%arg0: i32) -> (i32, i32) {
    %c0_i32 = arith.constant 0 : i32
    %c0_i32_0 = arith.constant 0 : i32
    %c0_i32_1 = arith.constant 0 : i32
    return %c0_i32, %c0_i32_0 : i32, i32
  }
  func.func @transform_3(%arg0: i32) -> (i32, i32) {
    %c0_i32 = arith.constant 0 : i32
    %c0_i32_0 = arith.constant 0 : i32
    return %arg0, %c0_i32 : i32, i32
  }
}

</mosaic_0001>

<llo_original>
// kernel: tpu_custom_call.1
$region0: #{tpu_custom_call.1}
  #allocation0 [shape = 'u32[]', space=smem, size = 0x4, offset = 0x4, fixed_abs, tag = 'smem constant byte address 0x4 - core index']
  #allocation1 [shape = 'u32[144,128]{1,0:T(1,128)}', space=vmem, size = 0x12000, scoped, tag = 'internal scratch']
  %s0 = inlined_call_operand.vmem [shape: f32[32,4], index: 0, kind: input, shape index: {}]
  %s1 = inlined_call_operand.vmem [shape: bf16[7,4,4], index: 1, kind: input, shape index: {}]
  %s2 = inlined_call_operand.vmem [shape: f32[1,4], index: 2, kind: input, shape index: {}]
  %s3 = inlined_call_operand.vmem [shape: f32[32,4], index: 3, kind: output, shape index: {}]
  %s4 = sld [smem:[#allocation0]]
  $region45: #{tpu_custom_call.1} parent=0
    _
  %s6 = ssub.s32 1, %s4
  %s7 = scalar_select 0, %s6, %s4
  loop: start=0, step=1, limit=4
  $region2: #{tpu_custom_call.1} parent=0 // loop_pre_header
    _
  $region3: #{tpu_custom_call.1} parent=0 // loop_header
    %s9 = sphi 0, %s13
    %p10 = scmp.ge.s32.totalorder %s9, 4
    %s19 = sphi 0, %s21
    %s22 = sphi 0, %s19
    %s23 = sphi 0, %s22
    %s39 = sphi 0, %s23
    %s43 = sphi 0, %s43
    %s45 = sphi 0, %s43
    %s46 = sphi 0, %s45
    %s60 = sphi 0, %s46
    %s64 = sphi 0, %s64
    %s66 = sphi 0, %s64
    %s67 = sphi 0, %s66
    %s81 = sphi 0, %s67
    %s87 = sphi 0, %s89
    %s90 = sphi 0, %s87
    %s91 = sphi 0, %s90
    %s107 = sphi 0, %s91
  $region4: #{tpu_custom_call.1} parent=0 // loop_header_branch
    %12 = sbr.rel (%p10) target = $region8
  $region5: #{tpu_custom_call.1} parent=0 // loop_body
    %s14 = ssub.s32 %s9, 1
    %s15 = ssub.s32 %s9, 2
    %s16 = sadd.s32 %s9, 1
    %s17 = ssub.s32 %s9, %s16
    %p18 = scmp.eq.s32.totalorder %s17, 0
    %s20 = sadd.s32 %s19, 1
    %s21 = scalar_select %p18, %s19, %s20
    %p24 = pneg %p18
    %p25 = scmp.eq.s32.totalorder %s9, 1
    %p26 = por %p24, %p25
    %p27 = scmp.ne.s32.totalorder %s19, %s22
    %p28 = scmp.eq.s32.totalorder %s9, 0
    %p29 = por %p27, %p28
    %p30 = scmp.ne.s32.totalorder %s19, %s22
    %p31 = scmp.eq.s32.totalorder %s14, 1
    %p32 = por %p30, %p31
    %p33 = scmp.ne.s32.totalorder %s22, %s23
    %p34 = scmp.eq.s32.totalorder %s14, 0
    %p35 = por %p33, %p34
    %p36 = scmp.ne.s32.totalorder %s22, %s23
    %p37 = scmp.eq.s32.totalorder %s15, 1
    %p38 = por %p36, %p37
    %p40 = scmp.ne.s32.totalorder %s23, %s39
    %p41 = scmp.eq.s32.totalorder %s15, 0
    %p42 = por %p40, %p41
    %s44 = sadd.s32 %s43, 1
    %p47 = scmp.eq.s32.totalorder %s9, 1
    %p48 = scmp.ne.s32.totalorder %s43, %s45
    %p49 = scmp.eq.s32.totalorder %s9, 0
    %p50 = por %p48, %p49
    %p51 = scmp.ne.s32.totalorder %s43, %s45
    %p52 = scmp.eq.s32.totalorder %s14, 1
    %p53 = por %p51, %p52
    %p54 = scmp.ne.s32.totalorder %s45, %s46
    %p55 = scmp.eq.s32.totalorder %s14, 0
    %p56 = por %p54, %p55
    %p57 = scmp.ne.s32.totalorder %s45, %s46
    %p58 = scmp.eq.s32.totalorder %s15, 1
    %p59 = por %p57, %p58
    %p61 = scmp.ne.s32.totalorder %s46, %s60
    %p62 = scmp.eq.s32.totalorder %s15, 0
    %p63 = por %p61, %p62
    %s65 = sadd.s32 %s64, 1
    %p68 = scmp.eq.s32.totalorder %s9, 1
    %p69 = scmp.ne.s32.totalorder %s64, %s66
    %p70 = scmp.eq.s32.totalorder %s9, 0
    %p71 = por %p69, %p70
    %p72 = scmp.ne.s32.totalorder %s64, %s66
    %p73 = scmp.eq.s32.totalorder %s14, 1
    %p74 = por %p72, %p73
    %p75 = scmp.ne.s32.totalorder %s66, %s67
    %p76 = scmp.eq.s32.totalorder %s14, 0
    %p77 = por %p75, %p76
    %p78 = scmp.ne.s32.totalorder %s66, %s67
    %p79 = scmp.eq.s32.totalorder %s15, 1
    %p80 = por %p78, %p79
    %p82 = scmp.ne.s32.totalorder %s67, %s81
    %p83 = scmp.eq.s32.totalorder %s15, 0
    %p84 = por %p82, %p83
    %s85 = ssub.s32 %s9, %s16
    %p86 = scmp.eq.s32.totalorder %s85, 0
    %s88 = sadd.s32 %s87, 1
    %s89 = scalar_select %p86, %s87, %s88
    %p92 = pneg %p86
    %p93 = scmp.eq.s32.totalorder %s9, 1
    %p94 = por %p92, %p93
    %p95 = scmp.ne.s32.totalorder %s87, %s90
    %p96 = scmp.eq.s32.totalorder %s9, 0
    %p97 = por %p95, %p96
    %p98 = scmp.ne.s32.totalorder %s87, %s90
    %p99 = scmp.eq.s32.totalorder %s14, 1
    %p100 = por %p98, %p99
    %p101 = scmp.ne.s32.totalorder %s90, %s91
    %p102 = scmp.eq.s32.totalorder %s14, 0
    %p103 = por %p101, %p102
    %p104 = scmp.ne.s32.totalorder %s90, %s91
    %p105 = scmp.eq.s32.totalorder %s15, 1
    %p106 = por %p104, %p105
    %p108 = scmp.ne.s32.totalorder %s91, %s107
    %p109 = scmp.eq.s32.totalorder %s15, 0
    %p110 = por %p108, %p109
    %p111 = scmp.le.s32.totalorder 1, %s9
    %p112 = scmp.lt.s32.totalorder %s9, 3
    %p113 = pnand %p111, %p112
    %p114 = pneg %p113
    // Predicated region
    $region9: #{tpu_custom_call.1} parent=5 // pred_check
      _
    $region10: #{tpu_custom_call.1} parent=5 // pred_check_branch
      %116 = sbr.rel (%p113) target = $region12
    $region11: #{tpu_custom_call.1} parent=5 // pred_region
      %s117 = ssub.s32 %s9, 1
      // Predicated region
      $region13: #{tpu_custom_call.1} parent=11 // pred_check
        %p118 = pneg %p56
      $region14: #{tpu_custom_call.1} parent=11 // pred_check_branch
        %120 = sbr.rel (%p118) target = $region16
      $region15: #{tpu_custom_call.1} parent=11 // pred_region
        _
      $region16: #{tpu_custom_call.1} parent=11 // pred_fallthru
        _
      // Predicated region
      $region17: #{tpu_custom_call.1} parent=11 // pred_check
        %p121 = pneg %p77
      $region18: #{tpu_custom_call.1} parent=11 // pred_check_branch
        %123 = sbr.rel (%p121) target = $region20
      $region19: #{tpu_custom_call.1} parent=11 // pred_region
        _
      $region20: #{tpu_custom_call.1} parent=11 // pred_fallthru
        _
    $region12: #{tpu_custom_call.1} parent=5 // pred_fallthru
      _
    %p124 = scmp.lt.s32.totalorder %s9, 2
    // Predicated region
    $region21: #{tpu_custom_call.1} parent=5 // pred_check
      %p125 = pneg %p124
    $region22: #{tpu_custom_call.1} parent=5 // pred_check_branch
      %127 = sbr.rel (%p125) target = $region24
    $region23: #{tpu_custom_call.1} parent=5 // pred_region
      // Predicated region
      $region25: #{tpu_custom_call.1} parent=23 // pred_check
        %p128 = pneg %p29
      $region26: #{tpu_custom_call.1} parent=23 // pred_check_branch
        %130 = sbr.rel (%p128) target = $region28
      $region27: #{tpu_custom_call.1} parent=23 // pred_region
        %s131 = smul.u32 2, %s9
        %p132 = scmp.lt.s32.totalorder %s131, 3
        %s133 = scalar_select %p132, %s131, 3
        %s134 = smul.addr %s133, 8
        %s135 = scalar_lea.vmem %s0, %s134
        %s136 = smul.u32 2, %s9
      $region28: #{tpu_custom_call.1} parent=23 // pred_fallthru
        _
    $region24: #{tpu_custom_call.1} parent=5 // pred_fallthru
      _
    %p137 = scmp.le.s32.totalorder 1, %s9
    %p138 = scmp.lt.s32.totalorder %s9, 3
    %p139 = pnand %p137, %p138
    %p140 = pneg %p139
    // Predicated region
    $region29: #{tpu_custom_call.1} parent=5 // pred_check
      _
    $region30: #{tpu_custom_call.1} parent=5 // pred_check_branch
      %142 = sbr.rel (%p139) target = $region32
    $region31: #{tpu_custom_call.1} parent=5 // pred_region
      %s143 = ssub.s32 %s9, 1
      %s144 = smul.u32 2, %s14
      %p145 = scmp.lt.s32.totalorder %s144, 3
      %s146 = scalar_select %p145, %s144, 3
      %s147 = smul.addr %s146, 8
      %s148 = scalar_lea.vmem %s0, %s147
      %p149 = pneg %p35
      %p150 = pneg %p32
      %p151 = pneg %p56
      %p152 = pneg %p53
      %p153 = pneg %p77
      %p154 = pneg %p74
      %p155 = pneg %p103
      %p156 = pneg %p100
      %s157 = smul.u32 2, %s14
      %p158 = scmp.lt.s32.totalorder %s157, 3
      %s159 = scalar_select %p158, %s157, 3
      %s160 = smul.addr %s159, 8
      %s161 = scalar_lea.vmem %s3, %s160
      %s162 = smul.u32 2, %s14
      %p163 = scmp.lt.s32.totalorder %s162, 3
      %s164 = scalar_select %p163, %s162, 3
      %s165 = smul.addr %s164, 8
      %s166 = scalar_lea.vmem %s0, %s165
      %s167 = smul.u32 2, %s14
      %s168 = smul.u32 2, %s14
      %p169 = scmp.lt.s32.totalorder %s168, 3
      %s170 = scalar_select %p169, %s168, 3
      %s171 = smul.addr %s170, 8
      %s172 = scalar_lea.vmem %s3, %s171
      %s173 = smul.u32 2, %s14
      %v175 = vld [vmem:[%s166] sm:$0xff]
      %v176 = vld [vmem:[%s166 + $0x8] sm:$0xff]
      %v177 = vlaneseq
      %v178 = vshrl.u32 %v177, 7
      %v179 = vadd.s32 %v178, 8
      %vm180 = vcmp.lt.s32.totalorder %v178, 0
      %v181 = vsub.s32 0, %v178
      %v182 = vsel %vm180, %v181, %v178
      %v183 = vshrl.u32 %v182, 4
      %v184 = vand.u32 %v182, 15
      %v185 = vsub.s32 0, %v184
      %v186 = vsel %vm180, %v185, %v184
      %vm187 = vcmp.lt.s32.totalorder %v179, 0
      %v188 = vsub.s32 0, %v179
      %v189 = vsel %vm187, %v188, %v179
      %v190 = vshrl.u32 %v189, 4
      %v191 = vand.u32 %v189, 15
      %v192 = vsub.s32 0, %v191
      %v193 = vsel %vm187, %v192, %v191
      %vm194 = vcmp.ne.s32.totalorder %v186, 0
      %vm195 = vcmp.ne.s32.totalorder %v193, 0
      %vm196 = vcmp.lt.s32.totalorder %v186, 0
      %vm197 = vcmp.lt.s32.totalorder %v193, 0
      %vm198 = vmand %vm196, %vm194
      %vm199 = vmand %vm197, %vm195
      %v200 = vadd.s32 %v186, 16
      %v201 = vadd.s32 %v193, 16
      %v202 = vsel %vm198, %v200, %v186
      %v203 = vsel %vm199, %v201, %v193
      %v204 = vadd.s32 %v202, 4294967293
      %v205 = vadd.s32 %v203, 4294967293
      %vm206 = vcmp.ge.s32.totalorder %v204, 0
      %vm207 = vcmp.ge.s32.totalorder %v205, 0
      %vm208 = vcmp.lt.s32.totalorder %v204, 16
      %vm209 = vcmp.lt.s32.totalorder %v205, 16
      %vm210 = vmand %vm206, %vm208
      %vm211 = vmand %vm207, %vm209
      %v212 = vadd.s32 %v202, 4294967294
      %v213 = vadd.s32 %v203, 4294967294
      %vm214 = vcmp.ge.s32.totalorder %v212, 0
      %vm215 = vcmp.ge.s32.totalorder %v213, 0
      %vm216 = vcmp.lt.s32.totalorder %v212, 16
      %vm217 = vcmp.lt.s32.totalorder %v213, 16
      %vm218 = vmand %vm214, %vm216
      %vm219 = vmand %vm215, %vm217
      %v220 = vadd.s32 %v202, 4294967295
      %v221 = vadd.s32 %v203, 4294967295
      %vm222 = vcmp.ge.s32.totalorder %v220, 0
      %vm223 = vcmp.ge.s32.totalorder %v221, 0
      %vm224 = vcmp.lt.s32.totalorder %v220, 16
      %vm225 = vcmp.lt.s32.totalorder %v221, 16
      %vm226 = vmand %vm222, %vm224
      %vm227 = vmand %vm223, %vm225
      %v228 = vadd.s32 %v202, 1
      %v229 = vadd.s32 %v203, 1
      %vm230 = vcmp.ge.s32.totalorder %v228, 0
      %vm231 = vcmp.ge.s32.totalorder %v229, 0
      %vm232 = vcmp.lt.s32.totalorder %v228, 16
      %vm233 = vcmp.lt.s32.totalorder %v229, 16
      %vm234 = vmand %vm230, %vm232
      %vm235 = vmand %vm231, %vm233
      %v236 = vadd.s32 %v202, 2
      %v237 = vadd.s32 %v203, 2
      %vm238 = vcmp.ge.s32.totalorder %v236, 0
      %vm239 = vcmp.ge.s32.totalorder %v237, 0
      %vm240 = vcmp.lt.s32.totalorder %v236, 16
      %vm241 = vcmp.lt.s32.totalorder %v237, 16
      %vm242 = vmand %vm238, %vm240
      %vm243 = vmand %vm239, %vm241
      %v244 = vadd.s32 %v202, 3
      %v245 = vadd.s32 %v203, 3
      %vm246 = vcmp.ge.s32.totalorder %v244, 0
      %vm247 = vcmp.ge.s32.totalorder %v245, 0
      %vm248 = vcmp.lt.s32.totalorder %v244, 16
      %vm249 = vcmp.lt.s32.totalorder %v245, 16
      %vm250 = vmand %vm246, %vm248
      %vm251 = vmand %vm247, %vm249
      %v252 = vrot.slane %v175, 5
      %v253 = vrot.slane %v176, 5
      %vm254 = vcmp.lt.s32.totalorder %v178, 3
      %v255 = vsel %vm254, %v252, %v253
      %v256 = vsel %vm254, %v253, %v252
      %v257 = vsel %vm210, 1, 0
      %v258 = vsel %vm211, 1, 0
      %vm259 = vcmp.eq.s32.totalorder %v257, 1
      %vm260 = vcmp.eq.s32.totalorder %v258, 1
      %v261 = vsel %vm259, %v256, 0.0
      %v262 = vsel %vm260, %v255, 0.0
      %v263 = vpack.c.bf16 %v262, %v261
      %v264 = vld [vmem:[%s1] sm:$0x3]
      %v265 = vrot.slane %v175, 6
      %v266 = vrot.slane %v176, 6
      %vm267 = vcmp.lt.s32.totalorder %v178, 2
      %v268 = vsel %vm267, %v265, %v266
      %v269 = vsel %vm267, %v266, %v265
      %v270 = vsel %vm218, 1, 0
      %v271 = vsel %vm219, 1, 0
      %vm272 = vcmp.eq.s32.totalorder %v270, 1
      %vm273 = vcmp.eq.s32.totalorder %v271, 1
      %v274 = vsel %vm272, %v269, 0.0
      %v275 = vsel %vm273, %v268, 0.0
      %v276 = vpack.c.bf16 %v275, %v274
      %s277 = scalar_lea.vmem %s1, 2
      %v278 = vld [vmem:[%s277] sm:$0x3]
      %vm279 = vcmask 31744
      %v281 = vsel %vm279, %v276, 0
      %vm283 = vcmask 1041408
      %v285 = vsel %vm283, %v278, 0
      %287 = vmatprep.subr.bf16.mxu0 0
      %288 = vmatpush1.bf16.msra.mxu0 0
      %289 = vmatprep.subr.bf16.mxu0 0
      %290 = vmatpush1.bf16.msra.mxu0 0
      %291 = vmatprep.subr.bf16.mxu0 0
      %292 = vmatpush1.bf16.msra.mxu0 0
      %293 = vmatprep.subr.bf16.mxu0 0
      %294 = vmatpush1.bf16.msra.mxu0 0
      %295 = vmatprep.subr.bf16.mxu0 0
      %296 = vmatpush1.bf16.msra.mxu0 0
      %297 = vmatprep.subr.bf16.mxu0 0
      %298 = vmatpush1.bf16.msra.mxu0 0
      %299 = vmatprep.subr.bf16.mxu0 0
      %300 = vmatpush1.bf16.msra.mxu0 0
      %301 = vmatprep.subr.bf16.mxu0 0
      %302 = vmatpush1.bf16.msra.mxu0 %v285
      %303 = vmatprep.subr.bf16.mxu0 0
      %304 = vmatpush2.bf16.msra.mxu0 0
      %305 = vmatprep.subr.bf16.mxu0 0
      %306 = vmatpush2.bf16.msra.mxu0 0
      %307 = vmatprep.subr.bf16.mxu0 0
      %308 = vmatpush2.bf16.msra.mxu0 0
      %309 = vmatprep.subr.bf16.mxu0 0
      %310 = vmatpush2.bf16.msra.mxu0 0
      %311 = vmatprep.subr.bf16.mxu0 0
      %312 = vmatpush2.bf16.msra.mxu0 0
      %313 = vmatprep.subr.bf16.mxu0 0
      %314 = vmatpush2.bf16.msra.mxu0 0
      %315 = vmatprep.subr.bf16.mxu0 0
      %316 = vmatpush2.bf16.msra.mxu0 0
      %317 = vmatprep.subr.bf16.mxu0 0
      %318 = vmatpush2.bf16.msra.mxu0 0
      %319 = vmatprep.mubr.bf16.mxu0 0
      %320 = vmatmul.mubr.bf16.gmra.mxu0 %v281
      %v321 = vpop.f32.mrf.mxu0
      %v322 = vadd.f32 0.0, %v321
      %v323 = vpop.f32.mrf.mxu0
      %v324 = vpop.f32.mrf.mxu0
      %v325 = vadd.f32 0.0, %v324
      %v326 = vpop.f32.mrf.mxu0
      %327 = vdwg.mxu0
      %v329 = vsel %vm279, %v263, 0
      %v332 = vsel %vm283, %v264, 0
      %334 = vmatprep.subr.bf16.mxu0 0
      %335 = vmatpush1.bf16.msra.mxu0 0
      %336 = vmatprep.subr.bf16.mxu0 0
      %337 = vmatpush1.bf16.msra.mxu0 0
      %338 = vmatprep.subr.bf16.mxu0 0
      %339 = vmatpush1.bf16.msra.mxu0 0
      %340 = vmatprep.subr.bf16.mxu0 0
      %341 = vmatpush1.bf16.msra.mxu0 0
      %342 = vmatprep.subr.bf16.mxu0 0
      %343 = vmatpush1.bf16.msra.mxu0 0
      %344 = vmatprep.subr.bf16.mxu0 0
      %345 = vmatpush1.bf16.msra.mxu0 0
      %346 = vmatprep.subr.bf16.mxu0 0
      %347 = vmatpush1.bf16.msra.mxu0 0
      %348 = vmatprep.subr.bf16.mxu0 0
      %349 = vmatpush1.bf16.msra.mxu0 %v332
      %350 = vmatprep.subr.bf16.mxu0 0
      %351 = vmatpush2.bf16.msra.mxu0 0
      %352 = vmatprep.subr.bf16.mxu0 0
      %353 = vmatpush2.bf16.msra.mxu0 0
      %354 = vmatprep.subr.bf16.mxu0 0
      %355 = vmatpush2.bf16.msra.mxu0 0
      %356 = vmatprep.subr.bf16.mxu0 0
      %357 = vmatpush2.bf16.msra.mxu0 0
      %358 = vmatprep.subr.bf16.mxu0 0
      %359 = vmatpush2.bf16.msra.mxu0 0
      %360 = vmatprep.subr.bf16.mxu0 0
      %361 = vmatpush2.bf16.msra.mxu0 0
      %362 = vmatprep.subr.bf16.mxu0 0
      %363 = vmatpush2.bf16.msra.mxu0 0
      %364 = vmatprep.subr.bf16.mxu0 0
      %365 = vmatpush2.bf16.msra.mxu0 0
      %366 = vmatprep.mubr.bf16.mxu0 0
      %367 = vmatmul.mubr.bf16.gmra.mxu0 %v329
      %v368 = vpop.f32.mrf.mxu0
      %v369 = vadd.f32 %v322, %v368
      %v370 = vpop.f32.mrf.mxu0
      %v371 = vpop.f32.mrf.mxu0
      %v372 = vadd.f32 %v325, %v371
      %v373 = vpop.f32.mrf.mxu0
      %374 = vdwg.mxu0
      %v375 = vrot.slane %v175, 7
      %v376 = vrot.slane %v176, 7
      %vm377 = vcmp.lt.s32.totalorder %v178, 1
      %v378 = vsel %vm377, %v375, %v376
      %v379 = vsel %vm377, %v376, %v375
      %v380 = vsel %vm226, 1, 0
      %v381 = vsel %vm227, 1, 0
      %vm382 = vcmp.eq.s32.totalorder %v380, 1
      %vm383 = vcmp.eq.s32.totalorder %v381, 1
      %v384 = vsel %vm382, %v379, 0.0
      %v385 = vsel %vm383, %v378, 0.0
      %v386 = vpack.c.bf16 %v385, %v384
      %s387 = scalar_lea.vmem %s1, 4
      %v388 = vld [vmem:[%s387] sm:$0x3]
      %v390 = vsel %vm279, %v386, 0
      %v393 = vsel %vm283, %v388, 0
      %395 = vmatprep.subr.bf16.mxu0 0
      %396 = vmatpush1.bf16.msra.mxu0 0
      %397 = vmatprep.subr.bf16.mxu0 0
      %398 = vmatpush1.bf16.msra.mxu0 0
      %399 = vmatprep.subr.bf16.mxu0 0
      %400 = vmatpush1.bf16.msra.mxu0 0
      %401 = vmatprep.subr.bf16.mxu0 0
      %402 = vmatpush1.bf16.msra.mxu0 0
      %403 = vmatprep.subr.bf16.mxu0 0
      %404 = vmatpush1.bf16.msra.mxu0 0
      %405 = vmatprep.subr.bf16.mxu0 0
      %406 = vmatpush1.bf16.msra.mxu0 0
      %407 = vmatprep.subr.bf16.mxu0 0
      %408 = vmatpush1.bf16.msra.mxu0 0
      %409 = vmatprep.subr.bf16.mxu0 0
      %410 = vmatpush1.bf16.msra.mxu0 %v393
      %411 = vmatprep.subr.bf16.mxu0 0
      %412 = vmatpush2.bf16.msra.mxu0 0
      %413 = vmatprep.subr.bf16.mxu0 0
      %414 = vmatpush2.bf16.msra.mxu0 0
      %415 = vmatprep.subr.bf16.mxu0 0
      %416 = vmatpush2.bf16.msra.mxu0 0
      %417 = vmatprep.subr.bf16.mxu0 0
      %418 = vmatpush2.bf16.msra.mxu0 0
      %419 = vmatprep.subr.bf16.mxu0 0
      %420 = vmatpush2.bf16.msra.mxu0 0
      %421 = vmatprep.subr.bf16.mxu0 0
      %422 = vmatpush2.bf16.msra.mxu0 0
      %423 = vmatprep.subr.bf16.mxu0 0
      %424 = vmatpush2.bf16.msra.mxu0 0
      %425 = vmatprep.subr.bf16.mxu0 0
      %426 = vmatpush2.bf16.msra.mxu0 0
      %427 = vmatprep.mubr.bf16.mxu0 0
      %428 = vmatmul.mubr.bf16.gmra.mxu0 %v390
      %v429 = vpop.f32.mrf.mxu0
      %v430 = vadd.f32 0.0, %v429
      %v431 = vpop.f32.mrf.mxu0
      %v432 = vpop.f32.mrf.mxu0
      %v433 = vadd.f32 0.0, %v432
      %v434 = vpop.f32.mrf.mxu0
      %435 = vdwg.mxu0
      %v436 = vadd.f32 %v369, %v430
      %v437 = vadd.f32 %v372, %v433
      %v438 = vpack.c.bf16 %v176, %v175
      %s439 = scalar_lea.vmem %s1, 6
      %v440 = vld [vmem:[%s439] sm:$0x3]
      %v442 = vsel %vm279, %v438, 0
      %v445 = vsel %vm283, %v440, 0
      %447 = vmatprep.subr.bf16.mxu0 0
      %448 = vmatpush1.bf16.msra.mxu0 0
      %449 = vmatprep.subr.bf16.mxu0 0
      %450 = vmatpush1.bf16.msra.mxu0 0
      %451 = vmatprep.subr.bf16.mxu0 0
      %452 = vmatpush1.bf16.msra.mxu0 0
      %453 = vmatprep.subr.bf16.mxu0 0
      %454 = vmatpush1.bf16.msra.mxu0 0
      %455 = vmatprep.subr.bf16.mxu0 0
      %456 = vmatpush1.bf16.msra.mxu0 0
      %457 = vmatprep.subr.bf16.mxu0 0
      %458 = vmatpush1.bf16.msra.mxu0 0
      %459 = vmatprep.subr.bf16.mxu0 0
      %460 = vmatpush1.bf16.msra.mxu0 0
      %461 = vmatprep.subr.bf16.mxu0 0
      %462 = vmatpush1.bf16.msra.mxu0 %v445
      %463 = vmatprep.subr.bf16.mxu0 0
      %464 = vmatpush2.bf16.msra.mxu0 0
      %465 = vmatprep.subr.bf16.mxu0 0
      %466 = vmatpush2.bf16.msra.mxu0 0
      %467 = vmatprep.subr.bf16.mxu0 0
      %468 = vmatpush2.bf16.msra.mxu0 0
      %469 = vmatprep.subr.bf16.mxu0 0
      %470 = vmatpush2.bf16.msra.mxu0 0
      %471 = vmatprep.subr.bf16.mxu0 0
      %472 = vmatpush2.bf16.msra.mxu0 0
      %473 = vmatprep.subr.bf16.mxu0 0
      %474 = vmatpush2.bf16.msra.mxu0 0
      %475 = vmatprep.subr.bf16.mxu0 0
      %476 = vmatpush2.bf16.msra.mxu0 0
      %477 = vmatprep.subr.bf16.mxu0 0
      %478 = vmatpush2.bf16.msra.mxu0 0
      %479 = vmatprep.mubr.bf16.mxu0 0
      %480 = vmatmul.mubr.bf16.gmra.mxu0 %v442
      %v481 = vpop.f32.mrf.mxu0
      %v482 = vadd.f32 0.0, %v481
      %v483 = vpop.f32.mrf.mxu0
      %v484 = vpop.f32.mrf.mxu0
      %v485 = vadd.f32 0.0, %v484
      %v486 = vpop.f32.mrf.mxu0
      %487 = vdwg.mxu0
      %v488 = vadd.f32 %v436, %v482
      %v489 = vadd.f32 %v437, %v485
      %v490 = vrot.slane %v175, 1
      %v491 = vrot.slane %v176, 1
      %vm492 = vcmp.lt.s32.totalorder %v178, 7
      %v493 = vsel %vm492, %v490, %v491
      %v494 = vsel %vm492, %v491, %v490
      %v495 = vsel %vm234, 1, 0
      %v496 = vsel %vm235, 1, 0
      %vm497 = vcmp.eq.s32.totalorder %v495, 1
      %vm498 = vcmp.eq.s32.totalorder %v496, 1
      %v499 = vsel %vm497, %v493, 0.0
      %v500 = vsel %vm498, %v494, 0.0
      %v501 = vpack.c.bf16 %v500, %v499
      %s502 = scalar_lea.vmem %s1, 8
      %v503 = vld [vmem:[%s502] sm:$0x3]
      %v505 = vsel %vm279, %v501, 0
      %v508 = vsel %vm283, %v503, 0
      %510 = vmatprep.subr.bf16.mxu0 0
      %511 = vmatpush1.bf16.msra.mxu0 0
      %512 = vmatprep.subr.bf16.mxu0 0
      %513 = vmatpush1.bf16.msra.mxu0 0
      %514 = vmatprep.subr.bf16.mxu0 0
      %515 = vmatpush1.bf16.msra.mxu0 0
      %516 = vmatprep.subr.bf16.mxu0 0
      %517 = vmatpush1.bf16.msra.mxu0 0
      %518 = vmatprep.subr.bf16.mxu0 0
      %519 = vmatpush1.bf16.msra.mxu0 0
      %520 = vmatprep.subr.bf16.mxu0 0
      %521 = vmatpush1.bf16.msra.mxu0 0
      %522 = vmatprep.subr.bf16.mxu0 0
      %523 = vmatpush1.bf16.msra.mxu0 0
      %524 = vmatprep.subr.bf16.mxu0 0
      %525 = vmatpush1.bf16.msra.mxu0 %v508
      %526 = vmatprep.subr.bf16.mxu0 0
      %527 = vmatpush2.bf16.msra.mxu0 0
      %528 = vmatprep.subr.bf16.mxu0 0
      %529 = vmatpush2.bf16.msra.mxu0 0
      %530 = vmatprep.subr.bf16.mxu0 0
      %531 = vmatpush2.bf16.msra.mxu0 0
      %532 = vmatprep.subr.bf16.mxu0 0
      %533 = vmatpush2.bf16.msra.mxu0 0
      %534 = vmatprep.subr.bf16.mxu0 0
      %535 = vmatpush2.bf16.msra.mxu0 0
      %536 = vmatprep.subr.bf16.mxu0 0
      %537 = vmatpush2.bf16.msra.mxu0 0
      %538 = vmatprep.subr.bf16.mxu0 0
      %539 = vmatpush2.bf16.msra.mxu0 0
      %540 = vmatprep.subr.bf16.mxu0 0
      %541 = vmatpush2.bf16.msra.mxu0 0
      %542 = vmatprep.mubr.bf16.mxu0 0
      %543 = vmatmul.mubr.bf16.gmra.mxu0 %v505
      %v544 = vpop.f32.mrf.mxu0
      %v545 = vadd.f32 0.0, %v544
      %v546 = vpop.f32.mrf.mxu0
      %v547 = vpop.f32.mrf.mxu0
      %v548 = vadd.f32 0.0, %v547
      %v549 = vpop.f32.mrf.mxu0
      %550 = vdwg.mxu0
      %v551 = vadd.f32 %v488, %v545
      %v552 = vadd.f32 %v489, %v548
      %v553 = vrot.slane %v175, 2
      %v554 = vrot.slane %v176, 2
      %vm555 = vcmp.lt.s32.totalorder %v178, 6
      %v556 = vsel %vm555, %v553, %v554
      %v557 = vsel %vm555, %v554, %v553
      %v558 = vsel %vm242, 1, 0
      %v559 = vsel %vm243, 1, 0
      %vm560 = vcmp.eq.s32.totalorder %v558, 1
      %vm561 = vcmp.eq.s32.totalorder %v559, 1
      %v562 = vsel %vm560, %v556, 0.0
      %v563 = vsel %vm561, %v557, 0.0
      %v564 = vpack.c.bf16 %v563, %v562
      %s565 = scalar_lea.vmem %s1, 10
      %v566 = vld [vmem:[%s565] sm:$0x3]
      %v568 = vsel %vm279, %v564, 0
      %v571 = vsel %vm283, %v566, 0
      %573 = vmatprep.subr.bf16.mxu0 0
      %574 = vmatpush1.bf16.msra.mxu0 0
      %575 = vmatprep.subr.bf16.mxu0 0
      %576 = vmatpush1.bf16.msra.mxu0 0
      %577 = vmatprep.subr.bf16.mxu0 0
      %578 = vmatpush1.bf16.msra.mxu0 0
      %579 = vmatprep.subr.bf16.mxu0 0
      %580 = vmatpush1.bf16.msra.mxu0 0
      %581 = vmatprep.subr.bf16.mxu0 0
      %582 = vmatpush1.bf16.msra.mxu0 0
      %583 = vmatprep.subr.bf16.mxu0 0
      %584 = vmatpush1.bf16.msra.mxu0 0
      %585 = vmatprep.subr.bf16.mxu0 0
      %586 = vmatpush1.bf16.msra.mxu0 0
      %587 = vmatprep.subr.bf16.mxu0 0
      %588 = vmatpush1.bf16.msra.mxu0 %v571
      %589 = vmatprep.subr.bf16.mxu0 0
      %590 = vmatpush2.bf16.msra.mxu0 0
      %591 = vmatprep.subr.bf16.mxu0 0
      %592 = vmatpush2.bf16.msra.mxu0 0
      %593 = vmatprep.subr.bf16.mxu0 0
      %594 = vmatpush2.bf16.msra.mxu0 0
      %595 = vmatprep.subr.bf16.mxu0 0
      %596 = vmatpush2.bf16.msra.mxu0 0
      %597 = vmatprep.subr.bf16.mxu0 0
      %598 = vmatpush2.bf16.msra.mxu0 0
      %599 = vmatprep.subr.bf16.mxu0 0
      %600 = vmatpush2.bf16.msra.mxu0 0
      %601 = vmatprep.subr.bf16.mxu0 0
      %602 = vmatpush2.bf16.msra.mxu0 0
      %603 = vmatprep.subr.bf16.mxu0 0
      %604 = vmatpush2.bf16.msra.mxu0 0
      %605 = vmatprep.mubr.bf16.mxu0 0
      %606 = vmatmul.mubr.bf16.gmra.mxu0 %v568
      %v607 = vpop.f32.mrf.mxu0
      %v608 = vadd.f32 0.0, %v607
      %v609 = vpop.f32.mrf.mxu0
      %v610 = vpop.f32.mrf.mxu0
      %v611 = vadd.f32 0.0, %v610
      %v612 = vpop.f32.mrf.mxu0
      %613 = vdwg.mxu0
      %v614 = vadd.f32 %v551, %v608
      %v615 = vadd.f32 %v552, %v611
      %v616 = vrot.slane %v175, 3
      %v617 = vrot.slane %v176, 3
      %vm618 = vcmp.lt.s32.totalorder %v178, 5
      %v619 = vsel %vm618, %v616, %v617
      %v620 = vsel %vm618, %v617, %v616
      %v621 = vsel %vm250, 1, 0
      %v622 = vsel %vm251, 1, 0
      %vm623 = vcmp.eq.s32.totalorder %v621, 1
      %vm624 = vcmp.eq.s32.totalorder %v622, 1
      %v625 = vsel %vm623, %v619, 0.0
      %v626 = vsel %vm624, %v620, 0.0
      %v627 = vpack.c.bf16 %v626, %v625
      %s628 = scalar_lea.vmem %s1, 12
      %v629 = vld [vmem:[%s628] sm:$0x3]
      %v631 = vsel %vm279, %v627, 0
      %v634 = vsel %vm283, %v629, 0
      %636 = vmatprep.subr.bf16.mxu0 0
      %637 = vmatpush1.bf16.msra.mxu0 0
      %638 = vmatprep.subr.bf16.mxu0 0
      %639 = vmatpush1.bf16.msra.mxu0 0
      %640 = vmatprep.subr.bf16.mxu0 0
      %641 = vmatpush1.bf16.msra.mxu0 0
      %642 = vmatprep.subr.bf16.mxu0 0
      %643 = vmatpush1.bf16.msra.mxu0 0
      %644 = vmatprep.subr.bf16.mxu0 0
      %645 = vmatpush1.bf16.msra.mxu0 0
      %646 = vmatprep.subr.bf16.mxu0 0
      %647 = vmatpush1.bf16.msra.mxu0 0
      %648 = vmatprep.subr.bf16.mxu0 0
      %649 = vmatpush1.bf16.msra.mxu0 0
      %650 = vmatprep.subr.bf16.mxu0 0
      %651 = vmatpush1.bf16.msra.mxu0 %v634
      %652 = vmatprep.subr.bf16.mxu0 0
      %653 = vmatpush2.bf16.msra.mxu0 0
      %654 = vmatprep.subr.bf16.mxu0 0
      %655 = vmatpush2.bf16.msra.mxu0 0
      %656 = vmatprep.subr.bf16.mxu0 0
      %657 = vmatpush2.bf16.msra.mxu0 0
      %658 = vmatprep.subr.bf16.mxu0 0
      %659 = vmatpush2.bf16.msra.mxu0 0
      %660 = vmatprep.subr.bf16.mxu0 0
      %661 = vmatpush2.bf16.msra.mxu0 0
      %662 = vmatprep.subr.bf16.mxu0 0
      %663 = vmatpush2.bf16.msra.mxu0 0
      %664 = vmatprep.subr.bf16.mxu0 0
      %665 = vmatpush2.bf16.msra.mxu0 0
      %666 = vmatprep.subr.bf16.mxu0 0
      %667 = vmatpush2.bf16.msra.mxu0 0
      %668 = vmatprep.mubr.bf16.mxu0 0
      %669 = vmatmul.mubr.bf16.gmra.mxu0 %v631
      %v670 = vpop.f32.mrf.mxu0
      %v671 = vadd.f32 0.0, %v670
      %v672 = vpop.f32.mrf.mxu0
      %v673 = vpop.f32.mrf.mxu0
      %v674 = vadd.f32 0.0, %v673
      %v675 = vpop.f32.mrf.mxu0
      %676 = vdwg.mxu0
      %v677 = vadd.f32 %v614, %v671
      %v678 = vadd.f32 %v615, %v674
      %v679 = vld [vmem:[%s2] sm:$0x1]
      %v681 = vlaneseq
      %v682 = vshrl.u32 %v681, 7
      %v683 = vsub.s32 0, %v682
      %v684 = vrot.slane %v679, %v683
      %v686 = vadd.f32 %v677, %v684
      %v687 = vadd.f32 %v678, %v684
      %v688 = vmax.f32 %v686, 0.0
      %v689 = vmax.f32 %v687, 0.0
      %690 = vst.msk [vmem:[%s172] sm:$0xff] %vm279, %v688
      %691 = vst.msk [vmem:[%s172 + $0x8] sm:$0xff] %vm279, %v689
      %s692 = smul.u32 2, %s14
      %p693 = scmp.lt.s32.totalorder %s692, 3
      %s694 = scalar_select %p693, %s692, 3
      %s695 = smul.addr %s694, 8
      %s696 = scalar_lea.vmem %s3, %s695
      // Predicated region
      $region33: #{tpu_custom_call.1} parent=31 // pred_check
        %p697 = pneg %p100
      $region34: #{tpu_custom_call.1} parent=31 // pred_check_branch
        %699 = sbr.rel (%p697) target = $region36
      $region35: #{tpu_custom_call.1} parent=31 // pred_region
        %s700 = smul.u32 2, %s14
      $region36: #{tpu_custom_call.1} parent=31 // pred_fallthru
        _
    $region32: #{tpu_custom_call.1} parent=5 // pred_fallthru
      _
    %p701 = scmp.le.s32.totalorder 2, %s9
    // Predicated region
    $region37: #{tpu_custom_call.1} parent=5 // pred_check
      %p702 = pneg %p701
    $region38: #{tpu_custom_call.1} parent=5 // pred_check_branch
      %704 = sbr.rel (%p702) target = $region40
    $region39: #{tpu_custom_call.1} parent=5 // pred_region
      %s705 = ssub.s32 %s9, 2
      // Predicated region
      $region41: #{tpu_custom_call.1} parent=39 // pred_check
        %p706 = pneg %p106
      $region42: #{tpu_custom_call.1} parent=39 // pred_check_branch
        %708 = sbr.rel (%p706) target = $region44
      $region43: #{tpu_custom_call.1} parent=39 // pred_region
        %s709 = smul.u32 2, %s15
        %p710 = scmp.lt.s32.totalorder %s709, 3
        %s711 = scalar_select %p710, %s709, 3
        %s712 = smul.addr %s711, 8
        %s713 = scalar_lea.vmem %s3, %s712
      $region44: #{tpu_custom_call.1} parent=39 // pred_fallthru
        _
    $region40: #{tpu_custom_call.1} parent=5 // pred_fallthru
      _
  $region6: #{tpu_custom_call.1} parent=0 // loop_footer
    %s13 = sadd.s32 1, %s9
  $region7: #{tpu_custom_call.1} parent=0 // loop_footer_branch
    %8 = sbr.rel target = $region3
  $region8: #{tpu_custom_call.1} parent=0 // loop_exit
    _

// kernel: tpu_custom_call.1
$region0: #{tpu_custom_call.1}
  #allocation0 [shape = 'u32[]', space=smem, size = 0x4, offset = 0x4, fixed_abs, tag = 'smem constant byte address 0x4 - core index']
  #allocation1 [shape = 'u32[144,128]{1,0:T(1,128)}', space=vmem, size = 0x12000, scoped, tag = 'internal scratch']
  %s0 = inlined_call_operand.vmem [shape: f32[32,4], index: 0, kind: input, shape index: {}]
  %s1 = inlined_call_operand.vmem [shape: bf16[7,4,4], index: 1, kind: input, shape index: {}]
  %s2 = inlined_call_operand.vmem [shape: f32[1,4], index: 2, kind: input, shape index: {}]
  %s3 = inlined_call_operand.vmem [shape: f32[32,4], index: 3, kind: output, shape index: {}]
  %s4 = sld [smem:[#allocation0]]
  $region45: #{tpu_custom_call.1} parent=0
    _
  %s6 = ssub.s32 1, %s4
  %s7 = scalar_select 0, %s6, %s4
  loop: start=0, step=1, limit=4
  $region2: #{tpu_custom_call.1} parent=0 // loop_pre_header
    _
  $region3: #{tpu_custom_call.1} parent=0 // loop_header
    %s9 = sphi 0, %s13
    %p10 = scmp.ge.s32.totalorder %s9, 4
    %s19 = sphi 0, %s21
    %s22 = sphi 0, %s19
    %s23 = sphi 0, %s22
    %s39 = sphi 0, %s23
    %s43 = sphi 0, %s43
    %s45 = sphi 0, %s43
    %s46 = sphi 0, %s45
    %s60 = sphi 0, %s46
    %s64 = sphi 0, %s64
    %s66 = sphi 0, %s64
    %s67 = sphi 0, %s66
    %s81 = sphi 0, %s67
    %s87 = sphi 0, %s89
    %s90 = sphi 0, %s87
    %s91 = sphi 0, %s90
    %s107 = sphi 0, %s91
  $region4: #{tpu_custom_call.1} parent=0 // loop_header_branch
    %12 = sbr.rel (%p10) target = $region8
  $region5: #{tpu_custom_call.1} parent=0 // loop_body
    %s14 = ssub.s32 %s9, 1
    %s15 = ssub.s32 %s9, 2
    %s16 = sadd.s32 %s9, 1
    %s17 = ssub.s32 %s9, %s16
    %p18 = scmp.eq.s32.totalorder %s17, 0
    %s20 = sadd.s32 %s19, 1
    %s21 = scalar_select %p18, %s19, %s20
    %p24 = pneg %p18
    %p25 = scmp.eq.s32.totalorder %s9, 1
    %p26 = por %p24, %p25
    %p27 = scmp.ne.s32.totalorder %s19, %s22
    %p28 = scmp.eq.s32.totalorder %s9, 0
    %p29 = por %p27, %p28
    %p30 = scmp.ne.s32.totalorder %s19, %s22
    %p31 = scmp.eq.s32.totalorder %s14, 1
    %p32 = por %p30, %p31
    %p33 = scmp.ne.s32.totalorder %s22, %s23
    %p34 = scmp.eq.s32.totalorder %s14, 0
    %p35 = por %p33, %p34
    %p36 = scmp.ne.s32.totalorder %s22, %s23
    %p37 = scmp.eq.s32.totalorder %s15, 1
    %p38 = por %p36, %p37
    %p40 = scmp.ne.s32.totalorder %s23, %s39
    %p41 = scmp.eq.s32.totalorder %s15, 0
    %p42 = por %p40, %p41
    %s44 = sadd.s32 %s43, 1
    %p47 = scmp.eq.s32.totalorder %s9, 1
    %p48 = scmp.ne.s32.totalorder %s43, %s45
    %p49 = scmp.eq.s32.totalorder %s9, 0
    %p50 = por %p48, %p49
    %p51 = scmp.ne.s32.totalorder %s43, %s45
    %p52 = scmp.eq.s32.totalorder %s14, 1
    %p53 = por %p51, %p52
    %p54 = scmp.ne.s32.totalorder %s45, %s46
    %p55 = scmp.eq.s32.totalorder %s14, 0
    %p56 = por %p54, %p55
    %p57 = scmp.ne.s32.totalorder %s45, %s46
    %p58 = scmp.eq.s32.totalorder %s15, 1
    %p59 = por %p57, %p58
    %p61 = scmp.ne.s32.totalorder %s46, %s60
    %p62 = scmp.eq.s32.totalorder %s15, 0
    %p63 = por %p61, %p62
    %s65 = sadd.s32 %s64, 1
    %p68 = scmp.eq.s32.totalorder %s9, 1
    %p69 = scmp.ne.s32.totalorder %s64, %s66
    %p70 = scmp.eq.s32.totalorder %s9, 0
    %p71 = por %p69, %p70
    %p72 = scmp.ne.s32.totalorder %s64, %s66
    %p73 = scmp.eq.s32.totalorder %s14, 1
    %p74 = por %p72, %p73
    %p75 = scmp.ne.s32.totalorder %s66, %s67
    %p76 = scmp.eq.s32.totalorder %s14, 0
    %p77 = por %p75, %p76
    %p78 = scmp.ne.s32.totalorder %s66, %s67
    %p79 = scmp.eq.s32.totalorder %s15, 1
    %p80 = por %p78, %p79
    %p82 = scmp.ne.s32.totalorder %s67, %s81
    %p83 = scmp.eq.s32.totalorder %s15, 0
    %p84 = por %p82, %p83
    %s85 = ssub.s32 %s9, %s16
    %p86 = scmp.eq.s32.totalorder %s85, 0
    %s88 = sadd.s32 %s87, 1
    %s89 = scalar_select %p86, %s87, %s88
    %p92 = pneg %p86
    %p93 = scmp.eq.s32.totalorder %s9, 1
    %p94 = por %p92, %p93
    %p95 = scmp.ne.s32.totalorder %s87, %s90
    %p96 = scmp.eq.s32.totalorder %s9, 0
    %p97 = por %p95, %p96
    %p98 = scmp.ne.s32.totalorder %s87, %s90
    %p99 = scmp.eq.s32.totalorder %s14, 1
    %p100 = por %p98, %p99
    %p101 = scmp.ne.s32.totalorder %s90, %s91
    %p102 = scmp.eq.s32.totalorder %s14, 0
    %p103 = por %p101, %p102
    %p104 = scmp.ne.s32.totalorder %s90, %s91
    %p105 = scmp.eq.s32.totalorder %s15, 1
    %p106 = por %p104, %p105
    %p108 = scmp.ne.s32.totalorder %s91, %s107
    %p109 = scmp.eq.s32.totalorder %s15, 0
    %p110 = por %p108, %p109
    %p111 = scmp.le.s32.totalorder 1, %s9
    %p112 = scmp.lt.s32.totalorder %s9, 3
    %p113 = pnand %p111, %p112
    %p114 = pneg %p113
    // Predicated region
    $region9: #{tpu_custom_call.1} parent=5 // pred_check
      _
    $region10: #{tpu_custom_call.1} parent=5 // pred_check_branch
      %116 = sbr.rel (%p113) target = $region12
    $region11: #{tpu_custom_call.1} parent=5 // pred_region
      %s117 = ssub.s32 %s9, 1
      // Predicated region
      $region13: #{tpu_custom_call.1} parent=11 // pred_check
        %p118 = pneg %p56
      $region14: #{tpu_custom_call.1} parent=11 // pred_check_branch
        %120 = sbr.rel (%p118) target = $region16
      $region15: #{tpu_custom_call.1} parent=11 // pred_region
        _
      $region16: #{tpu_custom_call.1} parent=11 // pred_fallthru
        _
      // Predicated region
      $region17: #{tpu_custom_call.1} parent=11 // pred_check
        %p121 = pneg %p77
      $region18: #{tpu_custom_call.1} parent=11 // pred_check_branch
        %123 = sbr.rel (%p121) target = $region20
      $region19: #{tpu_custom_call.1} parent=11 // pred_region
        _
      $region20: #{tpu_custom_call.1} parent=11 // pred_fallthru
        _
    $region12: #{tpu_custom_call.1} parent=5 // pred_fallthru
      _
    %p124 = scmp.lt.s32.totalorder %s9, 2
    // Predicated region
    $region21: #{tpu_custom_call.1} parent=5 // pred_check
      %p125 = pneg %p124
    $region22: #{tpu_custom_call.1} parent=5 // pred_check_branch
      %127 = sbr.rel (%p125) target = $region24
    $region23: #{tpu_custom_call.1} parent=5 // pred_region
      // Predicated region
      $region25: #{tpu_custom_call.1} parent=23 // pred_check
        %p128 = pneg %p29
      $region26: #{tpu_custom_call.1} parent=23 // pred_check_branch
        %130 = sbr.rel (%p128) target = $region28
      $region27: #{tpu_custom_call.1} parent=23 // pred_region
        %s131 = smul.u32 2, %s9
        %p132 = scmp.lt.s32.totalorder %s131, 3
        %s133 = scalar_select %p132, %s131, 3
        %s134 = smul.addr %s133, 8
        %s135 = scalar_lea.vmem %s0, %s134
        %s136 = smul.u32 2, %s9
      $region28: #{tpu_custom_call.1} parent=23 // pred_fallthru
        _
    $region24: #{tpu_custom_call.1} parent=5 // pred_fallthru
      _
    %p137 = scmp.le.s32.totalorder 1, %s9
    %p138 = scmp.lt.s32.totalorder %s9, 3
    %p139 = pnand %p137, %p138
    %p140 = pneg %p139
    // Predicated region
    $region29: #{tpu_custom_call.1} parent=5 // pred_check
      _
    $region30: #{tpu_custom_call.1} parent=5 // pred_check_branch
      %142 = sbr.rel (%p139) target = $region32
    $region31: #{tpu_custom_call.1} parent=5 // pred_region
      %s143 = ssub.s32 %s9, 1
      %s144 = smul.u32 2, %s14
      %p145 = scmp.lt.s32.totalorder %s144, 3
      %s146 = scalar_select %p145, %s144, 3
      %s147 = smul.addr %s146, 8
      %s148 = scalar_lea.vmem %s0, %s147
      %p149 = pneg %p35
      %p150 = pneg %p32
      %p151 = pneg %p56
      %p152 = pneg %p53
      %p153 = pneg %p77
      %p154 = pneg %p74
      %p155 = pneg %p103
      %p156 = pneg %p100
      %s157 = smul.u32 2, %s14
      %p158 = scmp.lt.s32.totalorder %s157, 3
      %s159 = scalar_select %p158, %s157, 3
      %s160 = smul.addr %s159, 8
      %s161 = scalar_lea.vmem %s3, %s160
      %s162 = smul.u32 2, %s14
      %p163 = scmp.lt.s32.totalorder %s162, 3
      %s164 = scalar_select %p163, %s162, 3
      %s165 = smul.addr %s164, 8
      %s166 = scalar_lea.vmem %s0, %s165
      %s167 = smul.u32 2, %s14
      %s168 = smul.u32 2, %s14
      %p169 = scmp.lt.s32.totalorder %s168, 3
      %s170 = scalar_select %p169, %s168, 3
      %s171 = smul.addr %s170, 8
      %s172 = scalar_lea.vmem %s3, %s171
      %s173 = smul.u32 2, %s14
      %v175 = vld [vmem:[%s166] sm:$0xff]
      %v176 = vld [vmem:[%s166 + $0x8] sm:$0xff]
      %v177 = vlaneseq
      %v178 = vshrl.u32 %v177, 7
      %v179 = vadd.s32 %v178, 8
      %vm180 = vcmp.lt.s32.totalorder %v178, 0
      %v181 = vsub.s32 0, %v178
      %v182 = vsel %vm180, %v181, %v178
      %v183 = vshrl.u32 %v182, 4
      %v184 = vand.u32 %v182, 15
      %v185 = vsub.s32 0, %v184
      %v186 = vsel %vm180, %v185, %v184
      %vm187 = vcmp.lt.s32.totalorder %v179, 0
      %v188 = vsub.s32 0, %v179
      %v189 = vsel %vm187, %v188, %v179
      %v190 = vshrl.u32 %v189, 4
      %v191 = vand.u32 %v189, 15
      %v192 = vsub.s32 0, %v191
      %v193 = vsel %vm187, %v192, %v191
      %vm194 = vcmp.ne.s32.totalorder %v186, 0
      %vm195 = vcmp.ne.s32.totalorder %v193, 0
      %vm196 = vcmp.lt.s32.totalorder %v186, 0
      %vm197 = vcmp.lt.s32.totalorder %v193, 0
      %vm198 = vmand %vm196, %vm194
      %vm199 = vmand %vm197, %vm195
      %v200 = vadd.s32 %v186, 16
      %v201 = vadd.s32 %v193, 16
      %v202 = vsel %vm198, %v200, %v186
      %v203 = vsel %vm199, %v201, %v193
      %v204 = vadd.s32 %v202, 4294967293
      %v205 = vadd.s32 %v203, 4294967293
      %vm206 = vcmp.ge.s32.totalorder %v204, 0
      %vm207 = vcmp.ge.s32.totalorder %v205, 0
      %vm208 = vcmp.lt.s32.totalorder %v204, 16
      %vm209 = vcmp.lt.s32.totalorder %v205, 16
      %vm210 = vmand %vm206, %vm208
      %vm211 = vmand %vm207, %vm209
      %v212 = vadd.s32 %v202, 4294967294
      %v213 = vadd.s32 %v203, 4294967294
      %vm214 = vcmp.ge.s32.totalorder %v212, 0
      %vm215 = vcmp.ge.s32.totalorder %v213, 0
      %vm216 = vcmp.lt.s32.totalorder %v212, 16
      %vm217 = vcmp.lt.s32.totalorder %v213, 16
      %vm218 = vmand %vm214, %vm216
      %vm219 = vmand %vm215, %vm217
      %v220 = vadd.s32 %v202, 4294967295
      %v221 = vadd.s32 %v203, 4294967295
      %vm222 = vcmp.ge.s32.totalorder %v220, 0
      %vm223 = vcmp.ge.s32.totalorder %v221, 0
      %vm224 = vcmp.lt.s32.totalorder %v220, 16
      %vm225 = vcmp.lt.s32.totalorder %v221, 16
      %vm226 = vmand %vm222, %vm224
      %vm227 = vmand %vm223, %vm225
      %v228 = vadd.s32 %v202, 1
      %v229 = vadd.s32 %v203, 1
      %vm230 = vcmp.ge.s32.totalorder %v228, 0
      %vm231 = vcmp.ge.s32.totalorder %v229, 0
      %vm232 = vcmp.lt.s32.totalorder %v228, 16
      %vm233 = vcmp.lt.s32.totalorder %v229, 16
      %vm234 = vmand %vm230, %vm232
      %vm235 = vmand %vm231, %vm233
      %v236 = vadd.s32 %v202, 2
      %v237 = vadd.s32 %v203, 2
      %vm238 = vcmp.ge.s32.totalorder %v236, 0
      %vm239 = vcmp.ge.s32.totalorder %v237, 0
      %vm240 = vcmp.lt.s32.totalorder %v236, 16
      %vm241 = vcmp.lt.s32.totalorder %v237, 16
      %vm242 = vmand %vm238, %vm240
      %vm243 = vmand %vm239, %vm241
      %v244 = vadd.s32 %v202, 3
      %v245 = vadd.s32 %v203, 3
      %vm246 = vcmp.ge.s32.totalorder %v244, 0
      %vm247 = vcmp.ge.s32.totalorder %v245, 0
      %vm248 = vcmp.lt.s32.totalorder %v244, 16
      %vm249 = vcmp.lt.s32.totalorder %v245, 16
      %vm250 = vmand %vm246, %vm248
      %vm251 = vmand %vm247, %vm249
      %v252 = vrot.slane %v175, 5
      %v253 = vrot.slane %v176, 5
      %vm254 = vcmp.lt.s32.totalorder %v178, 3
      %v255 = vsel %vm254, %v252, %v253
      %v256 = vsel %vm254, %v253, %v252
      %v257 = vsel %vm210, 1, 0
      %v258 = vsel %vm211, 1, 0
      %vm259 = vcmp.eq.s32.totalorder %v257, 1
      %vm260 = vcmp.eq.s32.totalorder %v258, 1
      %v261 = vsel %vm259, %v256, 0.0
      %v262 = vsel %vm260, %v255, 0.0
      %v263 = vpack.c.bf16 %v262, %v261
      %v264 = vld [vmem:[%s1] sm:$0x3]
      %v265 = vrot.slane %v175, 6
      %v266 = vrot.slane %v176, 6
      %vm267 = vcmp.lt.s32.totalorder %v178, 2
      %v268 = vsel %vm267, %v265, %v266
      %v269 = vsel %vm267, %v266, %v265
      %v270 = vsel %vm218, 1, 0
      %v271 = vsel %vm219, 1, 0
      %vm272 = vcmp.eq.s32.totalorder %v270, 1
      %vm273 = vcmp.eq.s32.totalorder %v271, 1
      %v274 = vsel %vm272, %v269, 0.0
      %v275 = vsel %vm273, %v268, 0.0
      %v276 = vpack.c.bf16 %v275, %v274
      %s277 = scalar_lea.vmem %s1, 2
      %v278 = vld [vmem:[%s277] sm:$0x3]
      %vm279 = vcmask 31744
      %v281 = vsel %vm279, %v276, 0
      %vm283 = vcmask 1041408
      %v285 = vsel %vm283, %v278, 0
      %287 = vmatprep.subr.bf16.mxu0 0
      %288 = vmatpush1.bf16.msra.mxu0 0
      %289 = vmatprep.subr.bf16.mxu0 0
      %290 = vmatpush1.bf16.msra.mxu0 0
      %291 = vmatprep.subr.bf16.mxu0 0
      %292 = vmatpush1.bf16.msra.mxu0 0
      %293 = vmatprep.subr.bf16.mxu0 0
      %294 = vmatpush1.bf16.msra.mxu0 0
      %295 = vmatprep.subr.bf16.mxu0 0
      %296 = vmatpush1.bf16.msra.mxu0 0
      %297 = vmatprep.subr.bf16.mxu0 0
      %298 = vmatpush1.bf16.msra.mxu0 0
      %299 = vmatprep.subr.bf16.mxu0 0
      %300 = vmatpush1.bf16.msra.mxu0 0
      %301 = vmatprep.subr.bf16.mxu0 0
      %302 = vmatpush1.bf16.msra.mxu0 %v285
      %303 = vmatprep.subr.bf16.mxu0 0
      %304 = vmatpush2.bf16.msra.mxu0 0
      %305 = vmatprep.subr.bf16.mxu0 0
      %306 = vmatpush2.bf16.msra.mxu0 0
      %307 = vmatprep.subr.bf16.mxu0 0
      %308 = vmatpush2.bf16.msra.mxu0 0
      %309 = vmatprep.subr.bf16.mxu0 0
      %310 = vmatpush2.bf16.msra.mxu0 0
      %311 = vmatprep.subr.bf16.mxu0 0
      %312 = vmatpush2.bf16.msra.mxu0 0
      %313 = vmatprep.subr.bf16.mxu0 0
      %314 = vmatpush2.bf16.msra.mxu0 0
      %315 = vmatprep.subr.bf16.mxu0 0
      %316 = vmatpush2.bf16.msra.mxu0 0
      %317 = vmatprep.subr.bf16.mxu0 0
      %318 = vmatpush2.bf16.msra.mxu0 0
      %319 = vmatprep.mubr.bf16.mxu0 0
      %320 = vmatmul.mubr.bf16.gmra.mxu0 %v281
      %v321 = vpop.f32.mrf.mxu0
      %v322 = vadd.f32 0.0, %v321
      %v323 = vpop.f32.mrf.mxu0
      %v324 = vpop.f32.mrf.mxu0
      %v325 = vadd.f32 0.0, %v324
      %v326 = vpop.f32.mrf.mxu0
      %327 = vdwg.mxu0
      %v329 = vsel %vm279, %v263, 0
      %v332 = vsel %vm283, %v264, 0
      %334 = vmatprep.subr.bf16.mxu0 0
      %335 = vmatpush1.bf16.msra.mxu0 0
      %336 = vmatprep.subr.bf16.mxu0 0
      %337 = vmatpush1.bf16.msra.mxu0 0
      %338 = vmatprep.subr.bf16.mxu0 0
      %339 = vmatpush1.bf16.msra.mxu0 0
      %340 = vmatprep.subr.bf16.mxu0 0
      %341 = vmatpush1.bf16.msra.mxu0 0
      %342 = vmatprep.subr.bf16.mxu0 0
      %343 = vmatpush1.bf16.msra.mxu0 0
      %344 = vmatprep.subr.bf16.mxu0 0
      %345 = vmatpush1.bf16.msra.mxu0 0
      %346 = vmatprep.subr.bf16.mxu0 0
      %347 = vmatpush1.bf16.msra.mxu0 0
      %348 = vmatprep.subr.bf16.mxu0 0
      %349 = vmatpush1.bf16.msra.mxu0 %v332
      %350 = vmatprep.subr.bf16.mxu0 0
      %351 = vmatpush2.bf16.msra.mxu0 0
      %352 = vmatprep.subr.bf16.mxu0 0
      %353 = vmatpush2.bf16.msra.mxu0 0
      %354 = vmatprep.subr.bf16.mxu0 0
      %355 = vmatpush2.bf16.msra.mxu0 0
      %356 = vmatprep.subr.bf16.mxu0 0
      %357 = vmatpush2.bf16.msra.mxu0 0
      %358 = vmatprep.subr.bf16.mxu0 0
      %359 = vmatpush2.bf16.msra.mxu0 0
      %360 = vmatprep.subr.bf16.mxu0 0
      %361 = vmatpush2.bf16.msra.mxu0 0
      %362 = vmatprep.subr.bf16.mxu0 0
      %363 = vmatpush2.bf16.msra.mxu0 0
      %364 = vmatprep.subr.bf16.mxu0 0
      %365 = vmatpush2.bf16.msra.mxu0 0
      %366 = vmatprep.mubr.bf16.mxu0 0
      %367 = vmatmul.mubr.bf16.gmra.mxu0 %v329
      %v368 = vpop.f32.mrf.mxu0
      %v369 = vadd.f32 %v322, %v368
      %v370 = vpop.f32.mrf.mxu0
      %v371 = vpop.f32.mrf.mxu0
      %v372 = vadd.f32 %v325, %v371
      %v373 = vpop.f32.mrf.mxu0
      %374 = vdwg.mxu0
      %v375 = vrot.slane %v175, 7
      %v376 = vrot.slane %v176, 7
      %vm377 = vcmp.lt.s32.totalorder %v178, 1
      %v378 = vsel %vm377, %v375, %v376
      %v379 = vsel %vm377, %v376, %v375
      %v380 = vsel %vm226, 1, 0
      %v381 = vsel %vm227, 1, 0
      %vm382 = vcmp.eq.s32.totalorder %v380, 1
      %vm383 = vcmp.eq.s32.totalorder %v381, 1
      %v384 = vsel %vm382, %v379, 0.0
      %v385 = vsel %vm383, %v378, 0.0
      %v386 = vpack.c.bf16 %v385, %v384
      %s387 = scalar_lea.vmem %s1, 4
      %v388 = vld [vmem:[%s387] sm:$0x3]
      %v390 = vsel %vm279, %v386, 0
      %v393 = vsel %vm283, %v388, 0
      %395 = vmatprep.subr.bf16.mxu0 0
      %396 = vmatpush1.bf16.msra.mxu0 0
      %397 = vmatprep.subr.bf16.mxu0 0
      %398 = vmatpush1.bf16.msra.mxu0 0
      %399 = vmatprep.subr.bf16.mxu0 0
      %400 = vmatpush1.bf16.msra.mxu0 0
      %401 = vmatprep.subr.bf16.mxu0 0
      %402 = vmatpush1.bf16.msra.mxu0 0
      %403 = vmatprep.subr.bf16.mxu0 0
      %404 = vmatpush1.bf16.msra.mxu0 0
      %405 = vmatprep.subr.bf16.mxu0 0
      %406 = vmatpush1.bf16.msra.mxu0 0
      %407 = vmatprep.subr.bf16.mxu0 0
      %408 = vmatpush1.bf16.msra.mxu0 0
      %409 = vmatprep.subr.bf16.mxu0 0
      %410 = vmatpush1.bf16.msra.mxu0 %v393
      %411 = vmatprep.subr.bf16.mxu0 0
      %412 = vmatpush2.bf16.msra.mxu0 0
      %413 = vmatprep.subr.bf16.mxu0 0
      %414 = vmatpush2.bf16.msra.mxu0 0
      %415 = vmatprep.subr.bf16.mxu0 0
      %416 = vmatpush2.bf16.msra.mxu0 0
      %417 = vmatprep.subr.bf16.mxu0 0
      %418 = vmatpush2.bf16.msra.mxu0 0
      %419 = vmatprep.subr.bf16.mxu0 0
      %420 = vmatpush2.bf16.msra.mxu0 0
      %421 = vmatprep.subr.bf16.mxu0 0
      %422 = vmatpush2.bf16.msra.mxu0 0
      %423 = vmatprep.subr.bf16.mxu0 0
      %424 = vmatpush2.bf16.msra.mxu0 0
      %425 = vmatprep.subr.bf16.mxu0 0
      %426 = vmatpush2.bf16.msra.mxu0 0
      %427 = vmatprep.mubr.bf16.mxu0 0
      %428 = vmatmul.mubr.bf16.gmra.mxu0 %v390
      %v429 = vpop.f32.mrf.mxu0
      %v430 = vadd.f32 0.0, %v429
      %v431 = vpop.f32.mrf.mxu0
      %v432 = vpop.f32.mrf.mxu0
      %v433 = vadd.f32 0.0, %v432
      %v434 = vpop.f32.mrf.mxu0
      %435 = vdwg.mxu0
      %v436 = vadd.f32 %v369, %v430
      %v437 = vadd.f32 %v372, %v433
      %v438 = vpack.c.bf16 %v176, %v175
      %s439 = scalar_lea.vmem %s1, 6
      %v440 = vld [vmem:[%s439] sm:$0x3]
      %v442 = vsel %vm279, %v438, 0
      %v445 = vsel %vm283, %v440, 0
      %447 = vmatprep.subr.bf16.mxu0 0
      %448 = vmatpush1.bf16.msra.mxu0 0
      %449 = vmatprep.subr.bf16.mxu0 0
      %450 = vmatpush1.bf16.msra.mxu0 0
      %451 = vmatprep.subr.bf16.mxu0 0
      %452 = vmatpush1.bf16.msra.mxu0 0
      %453 = vmatprep.subr.bf16.mxu0 0
      %454 = vmatpush1.bf16.msra.mxu0 0
      %455 = vmatprep.subr.bf16.mxu0 0
      %456 = vmatpush1.bf16.msra.mxu0 0
      %457 = vmatprep.subr.bf16.mxu0 0
      %458 = vmatpush1.bf16.msra.mxu0 0
      %459 = vmatprep.subr.bf16.mxu0 0
      %460 = vmatpush1.bf16.msra.mxu0 0
      %461 = vmatprep.subr.bf16.mxu0 0
      %462 = vmatpush1.bf16.msra.mxu0 %v445
      %463 = vmatprep.subr.bf16.mxu0 0
      %464 = vmatpush2.bf16.msra.mxu0 0
      %465 = vmatprep.subr.bf16.mxu0 0
      %466 = vmatpush2.bf16.msra.mxu0 0
      %467 = vmatprep.subr.bf16.mxu0 0
      %468 = vmatpush2.bf16.msra.mxu0 0
      %469 = vmatprep.subr.bf16.mxu0 0
      %470 = vmatpush2.bf16.msra.mxu0 0
      %471 = vmatprep.subr.bf16.mxu0 0
      %472 = vmatpush2.bf16.msra.mxu0 0
      %473 = vmatprep.subr.bf16.mxu0 0
      %474 = vmatpush2.bf16.msra.mxu0 0
      %475 = vmatprep.subr.bf16.mxu0 0
      %476 = vmatpush2.bf16.msra.mxu0 0
      %477 = vmatprep.subr.bf16.mxu0 0
      %478 = vmatpush2.bf16.msra.mxu0 0
      %479 = vmatprep.mubr.bf16.mxu0 0
      %480 = vmatmul.mubr.bf16.gmra.mxu0 %v442
      %v481 = vpop.f32.mrf.mxu0
      %v482 = vadd.f32 0.0, %v481
      %v483 = vpop.f32.mrf.mxu0
      %v484 = vpop.f32.mrf.mxu0
      %v485 = vadd.f32 0.0, %v484
      %v486 = vpop.f32.mrf.mxu0
      %487 = vdwg.mxu0
      %v488 = vadd.f32 %v436, %v482
      %v489 = vadd.f32 %v437, %v485
      %v490 = vrot.slane %v175, 1
      %v491 = vrot.slane %v176, 1
      %vm492 = vcmp.lt.s32.totalorder %v178, 7
      %v493 = vsel %vm492, %v490, %v491
      %v494 = vsel %vm492, %v491, %v490
      %v495 = vsel %vm234, 1, 0
      %v496 = vsel %vm235, 1, 0
      %vm497 = vcmp.eq.s32.totalorder %v495, 1
      %vm498 = vcmp.eq.s32.totalorder %v496, 1
      %v499 = vsel %vm497, %v493, 0.0
      %v500 = vsel %vm498, %v494, 0.0
      %v501 = vpack.c.bf16 %v500, %v499
      %s502 = scalar_lea.vmem %s1, 8
      %v503 = vld [vmem:[%s502] sm:$0x3]
      %v505 = vsel %vm279, %v501, 0
      %v508 = vsel %vm283, %v503, 0
      %510 = vmatprep.subr.bf16.mxu0 0
      %511 = vmatpush1.bf16.msra.mxu0 0
      %512 = vmatprep.subr.bf16.mxu0 0
      %513 = vmatpush1.bf16.msra.mxu0 0
      %514 = vmatprep.subr.bf16.mxu0 0
      %515 = vmatpush1.bf16.msra.mxu0 0
      %516 = vmatprep.subr.bf16.mxu0 0
      %517 = vmatpush1.bf16.msra.mxu0 0
      %518 = vmatprep.subr.bf16.mxu0 0
      %519 = vmatpush1.bf16.msra.mxu0 0
      %520 = vmatprep.subr.bf16.mxu0 0
      %521 = vmatpush1.bf16.msra.mxu0 0
      %522 = vmatprep.subr.bf16.mxu0 0
      %523 = vmatpush1.bf16.msra.mxu0 0
      %524 = vmatprep.subr.bf16.mxu0 0
      %525 = vmatpush1.bf16.msra.mxu0 %v508
      %526 = vmatprep.subr.bf16.mxu0 0
      %527 = vmatpush2.bf16.msra.mxu0 0
      %528 = vmatprep.subr.bf16.mxu0 0
      %529 = vmatpush2.bf16.msra.mxu0 0
      %530 = vmatprep.subr.bf16.mxu0 0
      %531 = vmatpush2.bf16.msra.mxu0 0
      %532 = vmatprep.subr.bf16.mxu0 0
      %533 = vmatpush2.bf16.msra.mxu0 0
      %534 = vmatprep.subr.bf16.mxu0 0
      %535 = vmatpush2.bf16.msra.mxu0 0
      %536 = vmatprep.subr.bf16.mxu0 0
      %537 = vmatpush2.bf16.msra.mxu0 0
      %538 = vmatprep.subr.bf16.mxu0 0
      %539 = vmatpush2.bf16.msra.mxu0 0
      %540 = vmatprep.subr.bf16.mxu0 0
      %541 = vmatpush2.bf16.msra.mxu0 0
      %542 = vmatprep.mubr.bf16.mxu0 0
      %543 = vmatmul.mubr.bf16.gmra.mxu0 %v505
      %v544 = vpop.f32.mrf.mxu0
      %v545 = vadd.f32 0.0, %v544
      %v546 = vpop.f32.mrf.mxu0
      %v547 = vpop.f32.mrf.mxu0
      %v548 = vadd.f32 0.0, %v547
      %v549 = vpop.f32.mrf.mxu0
      %550 = vdwg.mxu0
      %v551 = vadd.f32 %v488, %v545
      %v552 = vadd.f32 %v489, %v548
      %v553 = vrot.slane %v175, 2
      %v554 = vrot.slane %v176, 2
      %vm555 = vcmp.lt.s32.totalorder %v178, 6
      %v556 = vsel %vm555, %v553, %v554
      %v557 = vsel %vm555, %v554, %v553
      %v558 = vsel %vm242, 1, 0
      %v559 = vsel %vm243, 1, 0
      %vm560 = vcmp.eq.s32.totalorder %v558, 1
      %vm561 = vcmp.eq.s32.totalorder %v559, 1
      %v562 = vsel %vm560, %v556, 0.0
      %v563 = vsel %vm561, %v557, 0.0
      %v564 = vpack.c.bf16 %v563, %v562
      %s565 = scalar_lea.vmem %s1, 10
      %v566 = vld [vmem:[%s565] sm:$0x3]
      %v568 = vsel %vm279, %v564, 0
      %v571 = vsel %vm283, %v566, 0
      %573 = vmatprep.subr.bf16.mxu0 0
      %574 = vmatpush1.bf16.msra.mxu0 0
      %575 = vmatprep.subr.bf16.mxu0 0
      %576 = vmatpush1.bf16.msra.mxu0 0
      %577 = vmatprep.subr.bf16.mxu0 0
      %578 = vmatpush1.bf16.msra.mxu0 0
      %579 = vmatprep.subr.bf16.mxu0 0
      %580 = vmatpush1.bf16.msra.mxu0 0
      %581 = vmatprep.subr.bf16.mxu0 0
      %582 = vmatpush1.bf16.msra.mxu0 0
      %583 = vmatprep.subr.bf16.mxu0 0
      %584 = vmatpush1.bf16.msra.mxu0 0
      %585 = vmatprep.subr.bf16.mxu0 0
      %586 = vmatpush1.bf16.msra.mxu0 0
      %587 = vmatprep.subr.bf16.mxu0 0
      %588 = vmatpush1.bf16.msra.mxu0 %v571
      %589 = vmatprep.subr.bf16.mxu0 0
      %590 = vmatpush2.bf16.msra.mxu0 0
      %591 = vmatprep.subr.bf16.mxu0 0
      %592 = vmatpush2.bf16.msra.mxu0 0
      %593 = vmatprep.subr.bf16.mxu0 0
      %594 = vmatpush2.bf16.msra.mxu0 0
      %595 = vmatprep.subr.bf16.mxu0 0
      %596 = vmatpush2.bf16.msra.mxu0 0
      %597 = vmatprep.subr.bf16.mxu0 0
      %598 = vmatpush2.bf16.msra.mxu0 0
      %599 = vmatprep.subr.bf16.mxu0 0
      %600 = vmatpush2.bf16.msra.mxu0 0
      %601 = vmatprep.subr.bf16.mxu0 0
      %602 = vmatpush2.bf16.msra.mxu0 0
      %603 = vmatprep.subr.bf16.mxu0 0
      %604 = vmatpush2.bf16.msra.mxu0 0
      %605 = vmatprep.mubr.bf16.mxu0 0
      %606 = vmatmul.mubr.bf16.gmra.mxu0 %v568
      %v607 = vpop.f32.mrf.mxu0
      %v608 = vadd.f32 0.0, %v607
      %v609 = vpop.f32.mrf.mxu0
      %v610 = vpop.f32.mrf.mxu0
      %v611 = vadd.f32 0.0, %v610
      %v612 = vpop.f32.mrf.mxu0
      %613 = vdwg.mxu0
      %v614 = vadd.f32 %v551, %v608
      %v615 = vadd.f32 %v552, %v611
      %v616 = vrot.slane %v175, 3
      %v617 = vrot.slane %v176, 3
      %vm618 = vcmp.lt.s32.totalorder %v178, 5
      %v619 = vsel %vm618, %v616, %v617
      %v620 = vsel %vm618, %v617, %v616
      %v621 = vsel %vm250, 1, 0
      %v622 = vsel %vm251, 1, 0
      %vm623 = vcmp.eq.s32.totalorder %v621, 1
      %vm624 = vcmp.eq.s32.totalorder %v622, 1
      %v625 = vsel %vm623, %v619, 0.0
      %v626 = vsel %vm624, %v620, 0.0
      %v627 = vpack.c.bf16 %v626, %v625
      %s628 = scalar_lea.vmem %s1, 12
      %v629 = vld [vmem:[%s628] sm:$0x3]
      %v631 = vsel %vm279, %v627, 0
      %v634 = vsel %vm283, %v629, 0
      %636 = vmatprep.subr.bf16.mxu0 0
      %637 = vmatpush1.bf16.msra.mxu0 0
      %638 = vmatprep.subr.bf16.mxu0 0
      %639 = vmatpush1.bf16.msra.mxu0 0
      %640 = vmatprep.subr.bf16.mxu0 0
      %641 = vmatpush1.bf16.msra.mxu0 0
      %642 = vmatprep.subr.bf16.mxu0 0
      %643 = vmatpush1.bf16.msra.mxu0 0
      %644 = vmatprep.subr.bf16.mxu0 0
      %645 = vmatpush1.bf16.msra.mxu0 0
      %646 = vmatprep.subr.bf16.mxu0 0
      %647 = vmatpush1.bf16.msra.mxu0 0
      %648 = vmatprep.subr.bf16.mxu0 0
      %649 = vmatpush1.bf16.msra.mxu0 0
      %650 = vmatprep.subr.bf16.mxu0 0
      %651 = vmatpush1.bf16.msra.mxu0 %v634
      %652 = vmatprep.subr.bf16.mxu0 0
      %653 = vmatpush2.bf16.msra.mxu0 0
      %654 = vmatprep.subr.bf16.mxu0 0
      %655 = vmatpush2.bf16.msra.mxu0 0
      %656 = vmatprep.subr.bf16.mxu0 0
      %657 = vmatpush2.bf16.msra.mxu0 0
      %658 = vmatprep.subr.bf16.mxu0 0
      %659 = vmatpush2.bf16.msra.mxu0 0
      %660 = vmatprep.subr.bf16.mxu0 0
      %661 = vmatpush2.bf16.msra.mxu0 0
      %662 = vmatprep.subr.bf16.mxu0 0
      %663 = vmatpush2.bf16.msra.mxu0 0
      %664 = vmatprep.subr.bf16.mxu0 0
      %665 = vmatpush2.bf16.msra.mxu0 0
      %666 = vmatprep.subr.bf16.mxu0 0
      %667 = vmatpush2.bf16.msra.mxu0 0
      %668 = vmatprep.mubr.bf16.mxu0 0
      %669 = vmatmul.mubr.bf16.gmra.mxu0 %v631
      %v670 = vpop.f32.mrf.mxu0
      %v671 = vadd.f32 0.0, %v670
      %v672 = vpop.f32.mrf.mxu0
      %v673 = vpop.f32.mrf.mxu0
      %v674 = vadd.f32 0.0, %v673
      %v675 = vpop.f32.mrf.mxu0
      %676 = vdwg.mxu0
      %v677 = vadd.f32 %v614, %v671
      %v678 = vadd.f32 %v615, %v674
      %v679 = vld [vmem:[%s2] sm:$0x1]
      %v681 = vlaneseq
      %v682 = vshrl.u32 %v681, 7
      %v683 = vsub.s32 0, %v682
      %v684 = vrot.slane %v679, %v683
      %v686 = vadd.f32 %v677, %v684
      %v687 = vadd.f32 %v678, %v684
      %v688 = vmax.f32 %v686, 0.0
      %v689 = vmax.f32 %v687, 0.0
      %690 = vst.msk [vmem:[%s172] sm:$0xff] %vm279, %v688
      %691 = vst.msk [vmem:[%s172 + $0x8] sm:$0xff] %vm279, %v689
      %s692 = smul.u32 2, %s14
      %p693 = scmp.lt.s32.totalorder %s692, 3
      %s694 = scalar_select %p693, %s692, 3
      %s695 = smul.addr %s694, 8
      %s696 = scalar_lea.vmem %s3, %s695
      // Predicated region
      $region33: #{tpu_custom_call.1} parent=31 // pred_check
        %p697 = pneg %p100
      $region34: #{tpu_custom_call.1} parent=31 // pred_check_branch
        %699 = sbr.rel (%p697) target = $region36
      $region35: #{tpu_custom_call.1} parent=31 // pred_region
        %s700 = smul.u32 2, %s14
      $region36: #{tpu_custom_call.1} parent=31 // pred_fallthru
        _
    $region32: #{tpu_custom_call.1} parent=5 // pred_fallthru
      _
    %p701 = scmp.le.s32.totalorder 2, %s9
    // Predicated region
    $region37: #{tpu_custom_call.1} parent=5 // pred_check
      %p702 = pneg %p701
    $region38: #{tpu_custom_call.1} parent=5 // pred_check_branch
      %704 = sbr.rel (%p702) target = $region40
    $region39: #{tpu_custom_call.1} parent=5 // pred_region
      %s705 = ssub.s32 %s9, 2
      // Predicated region
      $region41: #{tpu_custom_call.1} parent=39 // pred_check
        %p706 = pneg %p106
      $region42: #{tpu_custom_call.1} parent=39 // pred_check_branch
        %708 = sbr.rel (%p706) target = $region44
      $region43: #{tpu_custom_call.1} parent=39 // pred_region
        %s709 = smul.u32 2, %s15
        %p710 = scmp.lt.s32.totalorder %s709, 3
        %s711 = scalar_select %p710, %s709, 3
        %s712 = smul.addr %s711, 8
        %s713 = scalar_lea.vmem %s3, %s712
      $region44: #{tpu_custom_call.1} parent=39 // pred_fallthru
        _
    $region40: #{tpu_custom_call.1} parent=5 // pred_fallthru
      _
  $region6: #{tpu_custom_call.1} parent=0 // loop_footer
    %s13 = sadd.s32 1, %s9
  $region7: #{tpu_custom_call.1} parent=0 // loop_footer_branch
    %8 = sbr.rel target = $region3
  $region8: #{tpu_custom_call.1} parent=0 // loop_exit
    _

</llo_original>
